<compile_context>
chip_gen: v6e
topology: v6e:2x2x1
jax: 0.10.0
libtpu: 0.0.40
codegen_flags: <defaults>
</compile_context>

<pallas_src>
import math

import jax
import jax.numpy as jnp
from jax.experimental import pallas as pl
from jax.experimental.pallas import tpu as pltpu

_HIGH = jax.lax.Precision.HIGHEST
_EPS = 1e-5  # torch.nn.LayerNorm default eps


def temporal_attention_kernel(
    x_ref, pos_ref,
    wqkv_ref, bqkv_ref,
    w0_ref, b0_ref, w1_ref, b1_ref, w2_ref, b2_ref,
    gamma_ref, beta_ref,
    out_ref, attn_ref,
):
    TB, N, S, H = x_ref.shape
    M = TB * N * S

    # positional encoding + flatten to an (M, H) activation matrix (leading-dim collapse only).
    xt = (x_ref[...] + pos_ref[...][None, None, :, :]).reshape(M, H)

    def linear(act, w_ref, b_ref):
        # bf16 x bf16 -> f32 accumulation: one native MXU pass (vs HIGHEST multi-pass).
        return (
            jnp.dot(act.astype(w_ref.dtype), w_ref[...],
                    preferred_element_type=jnp.float32)
            + b_ref[...]
        )

    # Fused Q|K|V projection: one MXU launch, one (H, 3H) weight tile, one bias broadcast.
    qkv = linear(xt, wqkv_ref, bqkv_ref)                 # (M, 3H) f32
    q = qkv[:, 0 * H:1 * H]                              # 1/sqrt(H) pre-folded into W_q, b_q
    k = qkv[:, 1 * H:2 * H]
    v = qkv[:, 2 * H:3 * H]

    # Attention per batch element (static unroll over TB; TB is small).
    # For non-toy N/S this broadcast-multiply-reduce should move to MXU dot_generals
    # batched over H; at N=4, S=8 the (N,N,S,H) intermediate is a handful of vregs.
    ctx_rows = []
    for tb in range(TB):
        r0 = tb * N * S
        qb = q[r0:r0 + N * S, :].reshape(N, S, H)
        kb = k[r0:r0 + N * S, :].reshape(N, S, H)
        vb = v[r0:r0 + N * S, :].reshape(N, S, H)

        # energy[i, j, h] = sum_s q[i, s, h] * k[j, s, h]      ('bish,bjsh->bijh', pre-scaled)
        energy = jnp.sum(qb[:, None, :, :] * kb[None, :, :, :], axis=2)       # (N, N, H)

        # softmax over j (dim=-2 of [b, i, j, h]); reciprocal on the EUP slot.
        m = jnp.max(energy, axis=1, keepdims=True)
        e = jnp.exp(energy - m)
        attn = e * pl.reciprocal(jnp.sum(e, axis=1, keepdims=True), approx=True)
        attn_ref[tb] = attn.astype(attn_ref.dtype)

        # context[i, s, h] = sum_j attn[i, j, h] * v[j, s, h]  ('bijh,bjsh->bish')
        ctx = jnp.sum(attn[:, :, None, :] * vb[None, :, :, :], axis=1)        # (N, S, H)
        ctx_rows.append(ctx.reshape(N * S, H))

    context = ctx_rows[0] if TB == 1 else jnp.concatenate(ctx_rows, axis=0)   # (M, H)

    # feed-forward: W_0 -> relu -> W_1 -> relu -> W_2 (bf16 MXU passes, f32 accumulation)
    f = jnp.maximum(linear(context, w0_ref, b0_ref), 0.0)
    f = jnp.maximum(linear(f, w1_ref, b1_ref), 0.0)
    f = linear(f, w2_ref, b2_ref)

    # LayerNorm over H, one-pass statistics (hl is None, so no residual add).
    mean = jnp.mean(f, axis=-1, keepdims=True)
    var = jnp.mean(f * f, axis=-1, keepdims=True) - mean * mean
    y = (f - mean) * jax.lax.rsqrt(var + _EPS) * gamma_ref[...] + beta_ref[...]

    out_ref[...] = y.reshape(TB, N, S, H).astype(out_ref.dtype)


def prepare_params(params):
    """One-time parameter transform: fuse Wq|Wk|Wv, fold 1/sqrt(H) into Wq/bq, cast weights to bf16."""
    (pos, wq, bq, wk, bk, wv, bv, w0, b0, w1, b1, w2, b2, gamma, beta) = params
    H = wq.shape[0]
    scale = 1.0 / math.sqrt(H)
    wqkv = jnp.concatenate([wq * scale, wk, wv], axis=1).astype(jnp.bfloat16)   # (H, 3H)
    bqkv = jnp.concatenate([bq * scale, bk, bv], axis=1)                        # (1, 3H) f32
    return (pos, wqkv, bqkv,
            w0.astype(jnp.bfloat16), b0,
            w1.astype(jnp.bfloat16), b1,
            w2.astype(jnp.bfloat16), b2,
            gamma, beta)


def temporal_attention(x, prepared_params, *, batch_block=None, attn_dtype=None):
    """x: (B, N, S, H) float32.  Returns (out: (B,N,S,H), attention: (B,N,N,H))."""
    B, N, S, H = x.shape
    (pos, wqkv, bqkv, w0, b0, w1, b1, w2, b2, gamma, beta) = prepared_params
    attn_dtype = x.dtype if attn_dtype is None else attn_dtype  # bf16 halves attn HBM writeback

    if batch_block is None:
        # Fill the MXU M-dim (TB*N*S rows per matmul) while keeping >= 2 grid steps so both
        # v7x TensorCores stay busy (v5e/v6e have a single TC, so this only costs VMEM there).
        batch_block = 1
        while (B % (batch_block * 2) == 0
               and B // (batch_block * 2) >= 2
               and batch_block * 2 * N * S <= 256):
            batch_block *= 2
    TB = batch_block
    assert B % TB == 0, (B, TB)

    def const(shape):
        # Grid-constant operand (weights / biases / pos / LN affine): same block every step.
        # At production H these should also be single-buffered to halve weight VMEM residency.
        return pl.BlockSpec(shape, lambda b: (0,) * len(shape))

    in_specs = [
        pl.BlockSpec((TB, N, S, H), lambda b: (b, 0, 0, 0)),   # x
        const((S, H)),                                         # pos_encoding
        const((H, 3 * H)), const((1, 3 * H)),                  # fused W_qkv, b_qkv (bf16 / f32)
        const((H, H)), const((1, H)),                          # W_0, b_0
        const((H, H)), const((1, H)),                          # W_1, b_1
        const((H, H)), const((1, H)),                          # W_2, b_2
        const((1, H)), const((1, H)),                          # LayerNorm gamma, beta
    ]
    out_specs = [
        pl.BlockSpec((TB, N, S, H), lambda b: (b, 0, 0, 0)),   # out
        pl.BlockSpec((TB, N, N, H), lambda b: (b, 0, 0, 0)),   # attention
    ]
    out_shape = [
        jax.ShapeDtypeStruct((B, N, S, H), x.dtype),
        jax.ShapeDtypeStruct((B, N, N, H), attn_dtype),
    ]

    return pl.pallas_call(
        temporal_attention_kernel,
        grid_spec=pltpu.PrefetchScalarGridSpec(
            num_scalar_prefetch=0,
            grid=(B // TB,),
            in_specs=in_specs,
            out_specs=out_specs,
        ),
        out_shape=out_shape,
        compiler_params=pltpu.CompilerParams(
            dimension_semantics=("parallel",),
            vmem_limit_bytes=32 * 1024 * 1024,   # explicit budget; v7x physical VMEM is 64 MiB
        ),
    )(x, pos, wqkv, bqkv, w0, b0, w1, b1, w2, b2, gamma, beta)


def reference(x, params):
    """Pure-JAX reference mirroring the PyTorch forward (hl=None).

    The linear layers use the same mixed-precision policy as the kernel (bf16 inputs,
    f32 accumulation); the attention contractions use HIGHEST precision, matching the
    kernel's exact-f32 broadcast-reduce path.
    """
    (pos, wq, bq, wk, bk, wv, bv, w0, b0, w1, b1, w2, b2, gamma, beta) = params
    B, N, S, H = x.shape
    xt = x + pos[None, None]

    def mm(a, w):
        return jnp.einsum("bnsh,hd->bnsd", a.astype(jnp.bfloat16), w.astype(jnp.bfloat16),
                          preferred_element_type=jnp.float32)

    q = mm(xt, wq) + bq
    k = mm(xt, wk) + bk
    v = mm(xt, wv) + bv
    energy = jnp.einsum("bish,bjsh->bijh", q, k, precision=_HIGH) / math.sqrt(H)
    attn = jax.nn.softmax(energy, axis=-2)
    context = jnp.einsum("bijh,bjsh->bish", attn, v, precision=_HIGH)
    f = jax.nn.relu(mm(context, w0) + b0)
    f = jax.nn.relu(mm(f, w1) + b1)
    f = mm(f, w2) + b2
    mean = f.mean(-1, keepdims=True)
    var = ((f - mean) ** 2).mean(-1, keepdims=True)
    out = (f - mean) / jnp.sqrt(var + _EPS) * gamma + beta
    return out, attn


def init_params(key, seq_len, hidden_dim):
    keys = jax.random.split(key, 8)

    def linear_init(k):
        kw, kb = jax.random.split(k)
        bound = 1.0 / math.sqrt(hidden_dim)
        w = jax.random.uniform(kw, (hidden_dim, hidden_dim), jnp.float32, -bound, bound)
        b = jax.random.uniform(kb, (1, hidden_dim), jnp.float32, -bound, bound)
        return w, b

    # xavier-uniform-style positional encoding
    limit = math.sqrt(6.0 / (seq_len + hidden_dim))
    pos = jax.random.uniform(keys[0], (seq_len, hidden_dim), jnp.float32, -limit, limit)
    wq, bq = linear_init(keys[1])
    wk, bk = linear_init(keys[2])
    wv, bv = linear_init(keys[3])
    w0, b0 = linear_init(keys[4])
    w1, b1 = linear_init(keys[5])
    w2, b2 = linear_init(keys[6])
    gamma = jnp.ones((1, hidden_dim), jnp.float32)   # LayerNorm default init
    beta = jnp.zeros((1, hidden_dim), jnp.float32)
    return (pos, wq, bq, wk, bk, wv, bv, w0, b0, w1, b1, w2, b2, gamma, beta)


if __name__ == "__main__":
    B, N, S, H = 2, 4, 8, 32   # batch, input_dim, seq_len, hidden_dim
    key = jax.random.PRNGKey(0)
    kx, kp = jax.random.split(key)
    x = jax.random.normal(kx, (B, N, S, H), jnp.float32)
    params = init_params(kp, S, H)
    prepared = prepare_params(params)   # one-time: fuse QKV, fold 1/sqrt(H), bf16 weights

    out, attn = temporal_attention(x, prepared)
    jax.block_until_ready((out, attn))

    ref_out, ref_attn = reference(x, params)
    assert out.shape == (B, N, S, H) and attn.shape == (B, N, N, H)
    # Tolerances sized for the mixed-precision kernel (bf16 MXU passes, folded-scale weight
    # rounding, EUP approximate reciprocal) compared against the reference above.
    assert jnp.allclose(out, ref_out, atol=2e-2, rtol=2e-2), \
        float(jnp.max(jnp.abs(out - ref_out)))
    assert jnp.allclose(attn, ref_attn, atol=1e-2, rtol=1e-2), \
        float(jnp.max(jnp.abs(attn - ref_attn)))

    print("KERNEL_OK")
</pallas_src>

<mosaic_0001>
module attributes {stable_mosaic.version = 11 : i64} {
  func.func @temporal_attention_kernel(%arg0: i32, %arg1: memref<1x4x8x32xf32, #tpu.memory_space<vmem>>, %arg2: memref<8x32xf32, #tpu.memory_space<vmem>>, %arg3: memref<32x96xbf16, #tpu.memory_space<vmem>>, %arg4: memref<1x96xf32, #tpu.memory_space<vmem>>, %arg5: memref<32x32xbf16, #tpu.memory_space<vmem>>, %arg6: memref<1x32xf32, #tpu.memory_space<vmem>>, %arg7: memref<32x32xbf16, #tpu.memory_space<vmem>>, %arg8: memref<1x32xf32, #tpu.memory_space<vmem>>, %arg9: memref<32x32xbf16, #tpu.memory_space<vmem>>, %arg10: memref<1x32xf32, #tpu.memory_space<vmem>>, %arg11: memref<1x32xf32, #tpu.memory_space<vmem>>, %arg12: memref<1x32xf32, #tpu.memory_space<vmem>>, %arg13: memref<1x4x8x32xf32, #tpu.memory_space<vmem>>, %arg14: memref<1x4x4x32xf32, #tpu.memory_space<vmem>>) attributes {dimension_semantics = [#tpu.dimension_semantics<parallel>], iteration_bounds = array<i64: 2>, scalar_prefetch = 0 : i64, scratch_operands = 0 : i64, tpu.core_type = #tpu.core_type<tc>, window_params = [{transform_indices = @transform_0, window_bounds = array<i64: 1, 4, 8, 32>}, {pipeline_mode = #tpu.pipeline_mode<synchronous>, transform_indices = @transform_1, window_bounds = array<i64: 8, 32>}, {pipeline_mode = #tpu.pipeline_mode<synchronous>, transform_indices = @transform_2, window_bounds = array<i64: 32, 96>}, {pipeline_mode = #tpu.pipeline_mode<synchronous>, transform_indices = @transform_3, window_bounds = array<i64: 1, 96>}, {pipeline_mode = #tpu.pipeline_mode<synchronous>, transform_indices = @transform_4, window_bounds = array<i64: 32, 32>}, {pipeline_mode = #tpu.pipeline_mode<synchronous>, transform_indices = @transform_5, window_bounds = array<i64: 1, 32>}, {pipeline_mode = #tpu.pipeline_mode<synchronous>, transform_indices = @transform_6, window_bounds = array<i64: 32, 32>}, {pipeline_mode = #tpu.pipeline_mode<synchronous>, transform_indices = @transform_7, window_bounds = array<i64: 1, 32>}, {pipeline_mode = #tpu.pipeline_mode<synchronous>, transform_indices = @transform_8, window_bounds = array<i64: 32, 32>}, {pipeline_mode = #tpu.pipeline_mode<synchronous>, transform_indices = @transform_9, window_bounds = array<i64: 1, 32>}, {pipeline_mode = #tpu.pipeline_mode<synchronous>, transform_indices = @transform_10, window_bounds = array<i64: 1, 32>}, {pipeline_mode = #tpu.pipeline_mode<synchronous>, transform_indices = @transform_11, window_bounds = array<i64: 1, 32>}, {transform_indices = @transform_12, window_bounds = array<i64: 1, 4, 8, 32>}, {transform_indices = @transform_13, window_bounds = array<i64: 1, 4, 4, 32>}]} {
    %c0 = arith.constant 0 : index
    %c0_0 = arith.constant 0 : index
    %c0_1 = arith.constant 0 : index
    %c0_2 = arith.constant 0 : index
    %0 = vector.load %arg1[%c0, %c0_0, %c0_1, %c0_2] : memref<1x4x8x32xf32, #tpu.memory_space<vmem>>, vector<1x4x8x32xf32>
    %c0_3 = arith.constant 0 : index
    %c0_4 = arith.constant 0 : index
    %1 = vector.load %arg2[%c0_3, %c0_4] : memref<8x32xf32, #tpu.memory_space<vmem>>, vector<8x32xf32>
    %2 = vector.shape_cast %1 : vector<8x32xf32> to vector<1x1x8x32xf32>
    %3 = vector.broadcast %2 : vector<1x1x8x32xf32> to vector<1x4x8x32xf32>
    %4 = arith.addf %0, %3 : vector<1x4x8x32xf32>
    %5 = vector.shape_cast %4 : vector<1x4x8x32xf32> to vector<32x32xf32>
    %6 = arith.truncf %5 : vector<32x32xf32> to vector<32x32xbf16>
    %c0_5 = arith.constant 0 : index
    %c0_6 = arith.constant 0 : index
    %7 = vector.load %arg3[%c0_5, %c0_6] : memref<32x96xbf16, #tpu.memory_space<vmem>>, vector<32x96xbf16>
    %cst = arith.constant dense<0.000000e+00> : vector<32x96xf32>
    %8 = tpu.matmul %6, %7, %cst {dimension_numbers = #tpu.dot_dimension_numbers<[1], [0], [0], [1], [0, 0, 1, 1], [], []>} : vector<32x32xbf16>, vector<32x96xbf16>, vector<32x96xf32> -> vector<32x96xf32>
    %c0_7 = arith.constant 0 : index
    %c0_8 = arith.constant 0 : index
    %9 = vector.load %arg4[%c0_7, %c0_8] : memref<1x96xf32, #tpu.memory_space<vmem>>, vector<1x96xf32>
    %10 = vector.broadcast %9 : vector<1x96xf32> to vector<32x96xf32>
    %11 = arith.addf %8, %10 : vector<32x96xf32>
    %12 = vector.extract_strided_slice %11 {offsets = [0, 0], sizes = [32, 32], strides = [1, 1]} : vector<32x96xf32> to vector<32x32xf32>
    %13 = vector.extract_strided_slice %11 {offsets = [0, 32], sizes = [32, 32], strides = [1, 1]} : vector<32x96xf32> to vector<32x32xf32>
    %14 = vector.extract_strided_slice %11 {offsets = [0, 64], sizes = [32, 32], strides = [1, 1]} : vector<32x96xf32> to vector<32x32xf32>
    %15 = vector.shape_cast %12 : vector<32x32xf32> to vector<4x8x32xf32>
    %16 = vector.shape_cast %13 : vector<32x32xf32> to vector<4x8x32xf32>
    %17 = vector.shape_cast %14 : vector<32x32xf32> to vector<4x8x32xf32>
    %18 = vector.shape_cast %15 : vector<4x8x32xf32> to vector<4x1x8x32xf32>
    %19 = vector.shape_cast %16 : vector<4x8x32xf32> to vector<1x4x8x32xf32>
    %20 = vector.broadcast %18 : vector<4x1x8x32xf32> to vector<4x4x8x32xf32>
    %21 = vector.broadcast %19 : vector<1x4x8x32xf32> to vector<4x4x8x32xf32>
    %22 = arith.mulf %20, %21 : vector<4x4x8x32xf32>
    %cst_9 = arith.constant dense<0.000000e+00> : vector<4x4x32xf32>
    %23 = vector.multi_reduction <add>, %22, %cst_9 [2] : vector<4x4x8x32xf32> to vector<4x4x32xf32>
    %cst_10 = arith.constant dense<0xFF800000> : vector<4x32xf32>
    %24 = vector.multi_reduction <maximumf>, %23, %cst_10 [1] : vector<4x4x32xf32> to vector<4x32xf32>
    %25 = vector.shape_cast %24 : vector<4x32xf32> to vector<4x1x32xf32>
    %26 = vector.broadcast %25 : vector<4x1x32xf32> to vector<4x4x32xf32>
    %27 = arith.subf %23, %26 : vector<4x4x32xf32>
    %28 = math.exp %27 : vector<4x4x32xf32>
    %cst_11 = arith.constant dense<0.000000e+00> : vector<4x32xf32>
    %29 = vector.multi_reduction <add>, %28, %cst_11 [1] : vector<4x4x32xf32> to vector<4x32xf32>
    %30 = vector.shape_cast %29 : vector<4x32xf32> to vector<4x1x32xf32>
    %31 = tpu.reciprocal %30 {approx = true} : vector<4x1x32xf32> -> vector<4x1x32xf32>
    %32 = vector.broadcast %31 : vector<4x1x32xf32> to vector<4x4x32xf32>
    %33 = arith.mulf %28, %32 : vector<4x4x32xf32>
    %c0_12 = arith.constant 0 : index
    %c0_13 = arith.constant 0 : index
    %c0_14 = arith.constant 0 : index
    %c0_15 = arith.constant 0 : index
    %34 = vector.load %arg14[%c0_12, %c0_13, %c0_14, %c0_15] : memref<1x4x4x32xf32, #tpu.memory_space<vmem>>, vector<1x4x4x32xf32>
    %35 = vector.shape_cast %34 : vector<1x4x4x32xf32> to vector<4x4x32xf32>
    %36 = vector.shape_cast %33 : vector<4x4x32xf32> to vector<1x4x4x32xf32>
    tpu.vector_store %arg14[%c0_12, %c0_13, %c0_14, %c0_15], %36 {strides = array<i32>} : memref<1x4x4x32xf32, #tpu.memory_space<vmem>>, vector<1x4x4x32xf32>,
    %37 = vector.shape_cast %33 : vector<4x4x32xf32> to vector<4x4x1x32xf32>
    %38 = vector.shape_cast %17 : vector<4x8x32xf32> to vector<1x4x8x32xf32>
    %39 = vector.broadcast %37 : vector<4x4x1x32xf32> to vector<4x4x8x32xf32>
    %40 = vector.broadcast %38 : vector<1x4x8x32xf32> to vector<4x4x8x32xf32>
    %41 = arith.mulf %39, %40 : vector<4x4x8x32xf32>
    %cst_16 = arith.constant dense<0.000000e+00> : vector<4x8x32xf32>
    %42 = vector.multi_reduction <add>, %41, %cst_16 [1] : vector<4x4x8x32xf32> to vector<4x8x32xf32>
    %43 = vector.shape_cast %42 : vector<4x8x32xf32> to vector<32x32xf32>
    %44 = arith.truncf %43 : vector<32x32xf32> to vector<32x32xbf16>
    %c0_17 = arith.constant 0 : index
    %c0_18 = arith.constant 0 : index
    %45 = vector.load %arg5[%c0_17, %c0_18] : memref<32x32xbf16, #tpu.memory_space<vmem>>, vector<32x32xbf16>
    %cst_19 = arith.constant dense<0.000000e+00> : vector<32x32xf32>
    %46 = tpu.matmul %44, %45, %cst_19 {dimension_numbers = #tpu.dot_dimension_numbers<[1], [0], [0], [1], [0, 0, 1, 1], [], []>} : vector<32x32xbf16>, vector<32x32xbf16>, vector<32x32xf32> -> vector<32x32xf32>
    %c0_20 = arith.constant 0 : index
    %c0_21 = arith.constant 0 : index
    %47 = vector.load %arg6[%c0_20, %c0_21] : memref<1x32xf32, #tpu.memory_space<vmem>>, vector<1x32xf32>
    %48 = vector.broadcast %47 : vector<1x32xf32> to vector<32x32xf32>
    %49 = arith.addf %46, %48 : vector<32x32xf32>
    %cst_22 = arith.constant 0.000000e+00 : f32
    %50 = vector.broadcast %cst_22 : f32 to vector<32x32xf32>
    %51 = arith.maximumf %49, %50 : vector<32x32xf32>
    %52 = arith.truncf %51 : vector<32x32xf32> to vector<32x32xbf16>
    %c0_23 = arith.constant 0 : index
    %c0_24 = arith.constant 0 : index
    %53 = vector.load %arg7[%c0_23, %c0_24] : memref<32x32xbf16, #tpu.memory_space<vmem>>, vector<32x32xbf16>
    %cst_25 = arith.constant dense<0.000000e+00> : vector<32x32xf32>
    %54 = tpu.matmul %52, %53, %cst_25 {dimension_numbers = #tpu.dot_dimension_numbers<[1], [0], [0], [1], [0, 0, 1, 1], [], []>} : vector<32x32xbf16>, vector<32x32xbf16>, vector<32x32xf32> -> vector<32x32xf32>
    %c0_26 = arith.constant 0 : index
    %c0_27 = arith.constant 0 : index
    %55 = vector.load %arg8[%c0_26, %c0_27] : memref<1x32xf32, #tpu.memory_space<vmem>>, vector<1x32xf32>
    %56 = vector.broadcast %55 : vector<1x32xf32> to vector<32x32xf32>
    %57 = arith.addf %54, %56 : vector<32x32xf32>
    %cst_28 = arith.constant 0.000000e+00 : f32
    %58 = vector.broadcast %cst_28 : f32 to vector<32x32xf32>
    %59 = arith.maximumf %57, %58 : vector<32x32xf32>
    %60 = arith.truncf %59 : vector<32x32xf32> to vector<32x32xbf16>
    %c0_29 = arith.constant 0 : index
    %c0_30 = arith.constant 0 : index
    %61 = vector.load %arg9[%c0_29, %c0_30] : memref<32x32xbf16, #tpu.memory_space<vmem>>, vector<32x32xbf16>
    %cst_31 = arith.constant dense<0.000000e+00> : vector<32x32xf32>
    %62 = tpu.matmul %60, %61, %cst_31 {dimension_numbers = #tpu.dot_dimension_numbers<[1], [0], [0], [1], [0, 0, 1, 1], [], []>} : vector<32x32xbf16>, vector<32x32xbf16>, vector<32x32xf32> -> vector<32x32xf32>
    %c0_32 = arith.constant 0 : index
    %c0_33 = arith.constant 0 : index
    %63 = vector.load %arg10[%c0_32, %c0_33] : memref<1x32xf32, #tpu.memory_space<vmem>>, vector<1x32xf32>
    %64 = vector.broadcast %63 : vector<1x32xf32> to vector<32x32xf32>
    %65 = arith.addf %62, %64 : vector<32x32xf32>
    %cst_34 = arith.constant dense<0.000000e+00> : vector<32xf32>
    %66 = vector.multi_reduction <add>, %65, %cst_34 [1] : vector<32x32xf32> to vector<32xf32>
    %67 = vector.shape_cast %66 : vector<32xf32> to vector<32x1xf32>
    %cst_35 = arith.constant 3.200000e+01 : f32
    %68 = vector.broadcast %cst_35 : f32 to vector<32x1xf32>
    %69 = arith.divf %67, %68 : vector<32x1xf32>
    %70 = arith.mulf %65, %65 : vector<32x32xf32>
    %cst_36 = arith.constant dense<0.000000e+00> : vector<32xf32>
    %71 = vector.multi_reduction <add>, %70, %cst_36 [1] : vector<32x32xf32> to vector<32xf32>
    %72 = vector.shape_cast %71 : vector<32xf32> to vector<32x1xf32>
    %cst_37 = arith.constant 3.200000e+01 : f32
    %73 = vector.broadcast %cst_37 : f32 to vector<32x1xf32>
    %74 = arith.divf %72, %73 : vector<32x1xf32>
    %75 = arith.mulf %69, %69 : vector<32x1xf32>
    %76 = arith.subf %74, %75 : vector<32x1xf32>
    %77 = vector.broadcast %69 : vector<32x1xf32> to vector<32x32xf32>
    %78 = arith.subf %65, %77 : vector<32x32xf32>
    %cst_38 = arith.constant 9.99999974E-6 : f32
    %79 = vector.broadcast %cst_38 : f32 to vector<32x1xf32>
    %80 = arith.addf %76, %79 : vector<32x1xf32>
    %81 = math.rsqrt %80 : vector<32x1xf32>
    %82 = vector.broadcast %81 : vector<32x1xf32> to vector<32x32xf32>
    %83 = arith.mulf %78, %82 : vector<32x32xf32>
    %c0_39 = arith.constant 0 : index
    %c0_40 = arith.constant 0 : index
    %84 = vector.load %arg11[%c0_39, %c0_40] : memref<1x32xf32, #tpu.memory_space<vmem>>, vector<1x32xf32>
    %85 = vector.broadcast %84 : vector<1x32xf32> to vector<32x32xf32>
    %86 = arith.mulf %83, %85 : vector<32x32xf32>
    %c0_41 = arith.constant 0 : index
    %c0_42 = arith.constant 0 : index
    %87 = vector.load %arg12[%c0_41, %c0_42] : memref<1x32xf32, #tpu.memory_space<vmem>>, vector<1x32xf32>
    %88 = vector.broadcast %87 : vector<1x32xf32> to vector<32x32xf32>
    %89 = arith.addf %86, %88 : vector<32x32xf32>
    %90 = vector.shape_cast %89 : vector<32x32xf32> to vector<1x4x8x32xf32>
    %c0_43 = arith.constant 0 : index
    %c0_44 = arith.constant 0 : index
    %c0_45 = arith.constant 0 : index
    %c0_46 = arith.constant 0 : index
    %91 = vector.load %arg13[%c0_43, %c0_44, %c0_45, %c0_46] : memref<1x4x8x32xf32, #tpu.memory_space<vmem>>, vector<1x4x8x32xf32>
    tpu.vector_store %arg13[%c0_43, %c0_44, %c0_45, %c0_46], %90 {strides = array<i32>} : memref<1x4x8x32xf32, #tpu.memory_space<vmem>>, vector<1x4x8x32xf32>,
    return
  }
  func.func @transform_0(%arg0: i32) -> (i32, i32, i32, i32) {
    %c0_i32 = arith.constant 0 : i32
    %c0_i32_0 = arith.constant 0 : i32
    %c0_i32_1 = arith.constant 0 : i32
    %c0_i32_2 = arith.constant 0 : i32
    return %arg0, %c0_i32, %c0_i32_0, %c0_i32_1 : i32, i32, i32, i32
  }
  func.func @transform_1(%arg0: i32) -> (i32, i32) {
    %c0_i32 = arith.constant 0 : i32
    %c0_i32_0 = arith.constant 0 : i32
    %c0_i32_1 = arith.constant 0 : i32
    return %c0_i32, %c0_i32_0 : i32, i32
  }
  func.func @transform_2(%arg0: i32) -> (i32, i32) {
    %c0_i32 = arith.constant 0 : i32
    %c0_i32_0 = arith.constant 0 : i32
    %c0_i32_1 = arith.constant 0 : i32
    return %c0_i32, %c0_i32_0 : i32, i32
  }
  func.func @transform_3(%arg0: i32) -> (i32, i32) {
    %c0_i32 = arith.constant 0 : i32
    %c0_i32_0 = arith.constant 0 : i32
    %c0_i32_1 = arith.constant 0 : i32
    return %c0_i32, %c0_i32_0 : i32, i32
  }
  func.func @transform_4(%arg0: i32) -> (i32, i32) {
    %c0_i32 = arith.constant 0 : i32
    %c0_i32_0 = arith.constant 0 : i32
    %c0_i32_1 = arith.constant 0 : i32
    return %c0_i32, %c0_i32_0 : i32, i32
  }
  func.func @transform_5(%arg0: i32) -> (i32, i32) {
    %c0_i32 = arith.constant 0 : i32
    %c0_i32_0 = arith.constant 0 : i32
    %c0_i32_1 = arith.constant 0 : i32
    return %c0_i32, %c0_i32_0 : i32, i32
  }
  func.func @transform_6(%arg0: i32) -> (i32, i32) {
    %c0_i32 = arith.constant 0 : i32
    %c0_i32_0 = arith.constant 0 : i32
    %c0_i32_1 = arith.constant 0 : i32
    return %c0_i32, %c0_i32_0 : i32, i32
  }
  func.func @transform_7(%arg0: i32) -> (i32, i32) {
    %c0_i32 = arith.constant 0 : i32
    %c0_i32_0 = arith.constant 0 : i32
    %c0_i32_1 = arith.constant 0 : i32
    return %c0_i32, %c0_i32_0 : i32, i32
  }
  func.func @transform_8(%arg0: i32) -> (i32, i32) {
    %c0_i32 = arith.constant 0 : i32
    %c0_i32_0 = arith.constant 0 : i32
    %c0_i32_1 = arith.constant 0 : i32
    return %c0_i32, %c0_i32_0 : i32, i32
  }
  func.func @transform_9(%arg0: i32) -> (i32, i32) {
    %c0_i32 = arith.constant 0 : i32
    %c0_i32_0 = arith.constant 0 : i32
    %c0_i32_1 = arith.constant 0 : i32
    return %c0_i32, %c0_i32_0 : i32, i32
  }
  func.func @transform_10(%arg0: i32) -> (i32, i32) {
    %c0_i32 = arith.constant 0 : i32
    %c0_i32_0 = arith.constant 0 : i32
    %c0_i32_1 = arith.constant 0 : i32
    return %c0_i32, %c0_i32_0 : i32, i32
  }
  func.func @transform_11(%arg0: i32) -> (i32, i32) {
    %c0_i32 = arith.constant 0 : i32
    %c0_i32_0 = arith.constant 0 : i32
    %c0_i32_1 = arith.constant 0 : i32
    return %c0_i32, %c0_i32_0 : i32, i32
  }
  func.func @transform_12(%arg0: i32) -> (i32, i32, i32, i32) {
    %c0_i32 = arith.constant 0 : i32
    %c0_i32_0 = arith.constant 0 : i32
    %c0_i32_1 = arith.constant 0 : i32
    %c0_i32_2 = arith.constant 0 : i32
    return %arg0, %c0_i32, %c0_i32_0, %c0_i32_1 : i32, i32, i32, i32
  }
  func.func @transform_13(%arg0: i32) -> (i32, i32, i32, i32) {
    %c0_i32 = arith.constant 0 : i32
    %c0_i32_0 = arith.constant 0 : i32
    %c0_i32_1 = arith.constant 0 : i32
    %c0_i32_2 = arith.constant 0 : i32
    return %arg0, %c0_i32, %c0_i32_0, %c0_i32_1 : i32, i32, i32, i32
  }
}

</mosaic_0001>

<llo_original>
// kernel: tpu_custom_call.1
$region0: #{tpu_custom_call.1}
  #allocation0 [shape = 'u32[]', space=smem, size = 0x4, offset = 0x4, fixed_abs, tag = 'smem constant byte address 0x4 - core index']
  #allocation1 [shape = 'u32[144,128]{1,0:T(1,128)}', space=vmem, size = 0x12000, scoped, tag = 'internal scratch']
  %s0 = inlined_call_operand.hbm [shape: f32[2,4,8,32], index: 0, kind: input, shape index: {}]
  %s1 = inlined_call_operand.hbm [shape: f32[8,32], index: 1, kind: input, shape index: {}]
  %s2 = inlined_call_operand.hbm [shape: bf16[32,96], index: 2, kind: input, shape index: {}]
  %s3 = inlined_call_operand.vmem [shape: f32[1,96], index: 3, kind: input, shape index: {}]
  %s4 = inlined_call_operand.hbm [shape: bf16[32,32], index: 4, kind: input, shape index: {}]
  %s5 = inlined_call_operand.vmem [shape: f32[1,32], index: 5, kind: input, shape index: {}]
  %s6 = inlined_call_operand.hbm [shape: bf16[32,32], index: 6, kind: input, shape index: {}]
  %s7 = inlined_call_operand.vmem [shape: f32[1,32], index: 7, kind: input, shape index: {}]
  %s8 = inlined_call_operand.hbm [shape: bf16[32,32], index: 8, kind: input, shape index: {}]
  %s9 = inlined_call_operand.vmem [shape: f32[1,32], index: 9, kind: input, shape index: {}]
  %s10 = inlined_call_operand.vmem [shape: f32[1,32], index: 10, kind: input, shape index: {}]
  %s11 = inlined_call_operand.vmem [shape: f32[1,32], index: 11, kind: input, shape index: {}]
  %s12 = inlined_call_operand.hbm [shape: f32[2,4,8,32], index: 12, kind: output, shape index: {0}]
  %s13 = inlined_call_operand.hbm [shape: f32[2,4,4,32], index: 13, kind: output, shape index: {1}]
  %14 = xla_tuple %s12, %s13
  %s15 = sld [smem:[#allocation0]]
  $region113: #{tpu_custom_call.1} parent=0
    _
  %s17 = ssub.s32 1, %s15
  %s18 = scalar_select 0, %s17, %s15
  $region1: #{tpu_custom_call.1} parent=0
    #allocation2 [shape = 'u8[32768]{0}', space=vmem, size = 0x8000, scoped, tag = 'input window, operand 0']
    #allocation3 [shape = 's32[2]{0}', space=sflag, size = 0x8, scoped, tag = 'scoped memory for tpu_custom_call.1']
    #allocation4 [shape = 's32[2]{0}', space=sflag, size = 0x8, scoped, tag = 'scoped memory for tpu_custom_call.1']
    #allocation5 [shape = 'u8[4096]{0}', space=vmem, size = 0x1000, scoped, tag = 'input window, operand 1, single buffered']
    #allocation6 [shape = 's32[1]{0}', space=sflag, size = 0x4, scoped, tag = 'scoped memory for tpu_custom_call.1']
    #allocation7 [shape = 'u8[8192]{0}', space=vmem, size = 0x2000, scoped, tag = 'input window, operand 2, single buffered']
    #allocation8 [shape = 'u8[8192]{0}', space=vmem, size = 0x2000, scoped, tag = 'input window, operand 4, single buffered']
    #allocation9 [shape = 's32[1]{0}', space=sflag, size = 0x4, scoped, tag = 'scoped memory for tpu_custom_call.1']
    #allocation10 [shape = 'u8[8192]{0}', space=vmem, size = 0x2000, scoped, tag = 'input window, operand 6, single buffered']
    #allocation11 [shape = 'u8[8192]{0}', space=vmem, size = 0x2000, scoped, tag = 'input window, operand 8, single buffered']
    #allocation12 [shape = 's32[1]{0}', space=sflag, size = 0x4, scoped, tag = 'scoped memory for tpu_custom_call.1']
    #allocation13 [shape = 'u8[32768]{0}', space=vmem, size = 0x8000, scoped, tag = 'output window, operand 0']
    #allocation14 [shape = 'u8[16384]{0}', space=vmem, size = 0x4000, scoped, tag = 'output window, operand 1']
    #allocation15 [shape = 's32[2]{0}', space=sflag, size = 0x8, scoped, tag = 'scoped memory for tpu_custom_call.1']
    %19 = vsyncpa [#allocation3], 0
    %s20 = scalar_lea.sflag [#allocation3], 1
    %21 = vsyncpa %s20, 0
    %22 = vsyncpa [#allocation6], 0
    %23 = vsyncpa [#allocation9], 0
    %24 = vsyncpa [#allocation12], 0
    %25 = vsyncpa [#allocation4], 0
    %s26 = scalar_lea.sflag [#allocation4], 1
    %27 = vsyncpa %s26, 0
    %28 = vsyncpa [#allocation15], 0
    %s29 = scalar_lea.sflag [#allocation15], 1
    %30 = vsyncpa %s29, 0
    loop: start=0, step=1, limit=4
    $region2: #{tpu_custom_call.1} parent=1 // loop_pre_header
      _
    $region3: #{tpu_custom_call.1} parent=1 // loop_header
      %s32 = sphi 0, %s36
      %p33 = scmp.ge.s32.totalorder %s32, 4
      %s42 = sphi 0, %s44
      %s45 = sphi 0, %s42
      %s46 = sphi 0, %s45
      %s62 = sphi 0, %s46
      %s66 = sphi 0, %s66
      %s68 = sphi 0, %s66
      %s69 = sphi 0, %s68
      %s83 = sphi 0, %s69
      %s87 = sphi 0, %s87
      %s89 = sphi 0, %s87
      %s90 = sphi 0, %s89
      %s104 = sphi 0, %s90
      %s108 = sphi 0, %s108
      %s110 = sphi 0, %s108
      %s111 = sphi 0, %s110
      %s125 = sphi 0, %s111
      %s129 = sphi 0, %s129
      %s131 = sphi 0, %s129
      %s132 = sphi 0, %s131
      %s146 = sphi 0, %s132
      %s150 = sphi 0, %s150
      %s152 = sphi 0, %s150
      %s153 = sphi 0, %s152
      %s167 = sphi 0, %s153
      %s171 = sphi 0, %s171
      %s173 = sphi 0, %s171
      %s174 = sphi 0, %s173
      %s188 = sphi 0, %s174
      %s192 = sphi 0, %s192
      %s194 = sphi 0, %s192
      %s195 = sphi 0, %s194
      %s209 = sphi 0, %s195
      %s213 = sphi 0, %s213
      %s215 = sphi 0, %s213
      %s216 = sphi 0, %s215
      %s230 = sphi 0, %s216
      %s234 = sphi 0, %s234
      %s236 = sphi 0, %s234
      %s237 = sphi 0, %s236
      %s251 = sphi 0, %s237
      %s255 = sphi 0, %s255
      %s257 = sphi 0, %s255
      %s258 = sphi 0, %s257
      %s272 = sphi 0, %s258
      %s276 = sphi 0, %s276
      %s278 = sphi 0, %s276
      %s279 = sphi 0, %s278
      %s293 = sphi 0, %s279
      %s299 = sphi 0, %s301
      %s302 = sphi 0, %s299
      %s303 = sphi 0, %s302
      %s319 = sphi 0, %s303
      %s325 = sphi 0, %s327
      %s328 = sphi 0, %s325
      %s329 = sphi 0, %s328
      %s345 = sphi 0, %s329
    $region4: #{tpu_custom_call.1} parent=1 // loop_header_branch
      %35 = sbr.rel (%p33) target = $region8
    $region5: #{tpu_custom_call.1} parent=1 // loop_body
      %s37 = ssub.s32 %s32, 1
      %s38 = ssub.s32 %s32, 2
      %s39 = sadd.s32 %s32, 1
      %s40 = ssub.s32 %s32, %s39
      %p41 = scmp.eq.s32.totalorder %s40, 0
      %s43 = sadd.s32 %s42, 1
      %s44 = scalar_select %p41, %s42, %s43
      %p47 = pneg %p41
      %p48 = scmp.eq.s32.totalorder %s32, 1
      %p49 = por %p47, %p48
      %p50 = scmp.ne.s32.totalorder %s42, %s45
      %p51 = scmp.eq.s32.totalorder %s32, 0
      %p52 = por %p50, %p51
      %p53 = scmp.ne.s32.totalorder %s42, %s45
      %p54 = scmp.eq.s32.totalorder %s37, 1
      %p55 = por %p53, %p54
      %p56 = scmp.ne.s32.totalorder %s45, %s46
      %p57 = scmp.eq.s32.totalorder %s37, 0
      %p58 = por %p56, %p57
      %p59 = scmp.ne.s32.totalorder %s45, %s46
      %p60 = scmp.eq.s32.totalorder %s38, 1
      %p61 = por %p59, %p60
      %p63 = scmp.ne.s32.totalorder %s46, %s62
      %p64 = scmp.eq.s32.totalorder %s38, 0
      %p65 = por %p63, %p64
      %s67 = sadd.s32 %s66, 1
      %p70 = scmp.eq.s32.totalorder %s32, 1
      %p71 = scmp.ne.s32.totalorder %s66, %s68
      %p72 = scmp.eq.s32.totalorder %s32, 0
      %p73 = por %p71, %p72
      %p74 = scmp.ne.s32.totalorder %s66, %s68
      %p75 = scmp.eq.s32.totalorder %s37, 1
      %p76 = por %p74, %p75
      %p77 = scmp.ne.s32.totalorder %s68, %s69
      %p78 = scmp.eq.s32.totalorder %s37, 0
      %p79 = por %p77, %p78
      %p80 = scmp.ne.s32.totalorder %s68, %s69
      %p81 = scmp.eq.s32.totalorder %s38, 1
      %p82 = por %p80, %p81
      %p84 = scmp.ne.s32.totalorder %s69, %s83
      %p85 = scmp.eq.s32.totalorder %s38, 0
      %p86 = por %p84, %p85
      %s88 = sadd.s32 %s87, 1
      %p91 = scmp.eq.s32.totalorder %s32, 1
      %p92 = scmp.ne.s32.totalorder %s87, %s89
      %p93 = scmp.eq.s32.totalorder %s32, 0
      %p94 = por %p92, %p93
      %p95 = scmp.ne.s32.totalorder %s87, %s89
      %p96 = scmp.eq.s32.totalorder %s37, 1
      %p97 = por %p95, %p96
      %p98 = scmp.ne.s32.totalorder %s89, %s90
      %p99 = scmp.eq.s32.totalorder %s37, 0
      %p100 = por %p98, %p99
      %p101 = scmp.ne.s32.totalorder %s89, %s90
      %p102 = scmp.eq.s32.totalorder %s38, 1
      %p103 = por %p101, %p102
      %p105 = scmp.ne.s32.totalorder %s90, %s104
      %p106 = scmp.eq.s32.totalorder %s38, 0
      %p107 = por %p105, %p106
      %s109 = sadd.s32 %s108, 1
      %p112 = scmp.eq.s32.totalorder %s32, 1
      %p113 = scmp.ne.s32.totalorder %s108, %s110
      %p114 = scmp.eq.s32.totalorder %s32, 0
      %p115 = por %p113, %p114
      %p116 = scmp.ne.s32.totalorder %s108, %s110
      %p117 = scmp.eq.s32.totalorder %s37, 1
      %p118 = por %p116, %p117
      %p119 = scmp.ne.s32.totalorder %s110, %s111
      %p120 = scmp.eq.s32.totalorder %s37, 0
      %p121 = por %p119, %p120
      %p122 = scmp.ne.s32.totalorder %s110, %s111
      %p123 = scmp.eq.s32.totalorder %s38, 1
      %p124 = por %p122, %p123
      %p126 = scmp.ne.s32.totalorder %s111, %s125
      %p127 = scmp.eq.s32.totalorder %s38, 0
      %p128 = por %p126, %p127
      %s130 = sadd.s32 %s129, 1
      %p133 = scmp.eq.s32.totalorder %s32, 1
      %p134 = scmp.ne.s32.totalorder %s129, %s131
      %p135 = scmp.eq.s32.totalorder %s32, 0
      %p136 = por %p134, %p135
      %p137 = scmp.ne.s32.totalorder %s129, %s131
      %p138 = scmp.eq.s32.totalorder %s37, 1
      %p139 = por %p137, %p138
      %p140 = scmp.ne.s32.totalorder %s131, %s132
      %p141 = scmp.eq.s32.totalorder %s37, 0
      %p142 = por %p140, %p141
      %p143 = scmp.ne.s32.totalorder %s131, %s132
      %p144 = scmp.eq.s32.totalorder %s38, 1
      %p145 = por %p143, %p144
      %p147 = scmp.ne.s32.totalorder %s132, %s146
      %p148 = scmp.eq.s32.totalorder %s38, 0
      %p149 = por %p147, %p148
      %s151 = sadd.s32 %s150, 1
      %p154 = scmp.eq.s32.totalorder %s32, 1
      %p155 = scmp.ne.s32.totalorder %s150, %s152
      %p156 = scmp.eq.s32.totalorder %s32, 0
      %p157 = por %p155, %p156
      %p158 = scmp.ne.s32.totalorder %s150, %s152
      %p159 = scmp.eq.s32.totalorder %s37, 1
      %p160 = por %p158, %p159
      %p161 = scmp.ne.s32.totalorder %s152, %s153
      %p162 = scmp.eq.s32.totalorder %s37, 0
      %p163 = por %p161, %p162
      %p164 = scmp.ne.s32.totalorder %s152, %s153
      %p165 = scmp.eq.s32.totalorder %s38, 1
      %p166 = por %p164, %p165
      %p168 = scmp.ne.s32.totalorder %s153, %s167
      %p169 = scmp.eq.s32.totalorder %s38, 0
      %p170 = por %p168, %p169
      %s172 = sadd.s32 %s171, 1
      %p175 = scmp.eq.s32.totalorder %s32, 1
      %p176 = scmp.ne.s32.totalorder %s171, %s173
      %p177 = scmp.eq.s32.totalorder %s32, 0
      %p178 = por %p176, %p177
      %p179 = scmp.ne.s32.totalorder %s171, %s173
      %p180 = scmp.eq.s32.totalorder %s37, 1
      %p181 = por %p179, %p180
      %p182 = scmp.ne.s32.totalorder %s173, %s174
      %p183 = scmp.eq.s32.totalorder %s37, 0
      %p184 = por %p182, %p183
      %p185 = scmp.ne.s32.totalorder %s173, %s174
      %p186 = scmp.eq.s32.totalorder %s38, 1
      %p187 = por %p185, %p186
      %p189 = scmp.ne.s32.totalorder %s174, %s188
      %p190 = scmp.eq.s32.totalorder %s38, 0
      %p191 = por %p189, %p190
      %s193 = sadd.s32 %s192, 1
      %p196 = scmp.eq.s32.totalorder %s32, 1
      %p197 = scmp.ne.s32.totalorder %s192, %s194
      %p198 = scmp.eq.s32.totalorder %s32, 0
      %p199 = por %p197, %p198
      %p200 = scmp.ne.s32.totalorder %s192, %s194
      %p201 = scmp.eq.s32.totalorder %s37, 1
      %p202 = por %p200, %p201
      %p203 = scmp.ne.s32.totalorder %s194, %s195
      %p204 = scmp.eq.s32.totalorder %s37, 0
      %p205 = por %p203, %p204
      %p206 = scmp.ne.s32.totalorder %s194, %s195
      %p207 = scmp.eq.s32.totalorder %s38, 1
      %p208 = por %p206, %p207
      %p210 = scmp.ne.s32.totalorder %s195, %s209
      %p211 = scmp.eq.s32.totalorder %s38, 0
      %p212 = por %p210, %p211
      %s214 = sadd.s32 %s213, 1
      %p217 = scmp.eq.s32.totalorder %s32, 1
      %p218 = scmp.ne.s32.totalorder %s213, %s215
      %p219 = scmp.eq.s32.totalorder %s32, 0
      %p220 = por %p218, %p219
      %p221 = scmp.ne.s32.totalorder %s213, %s215
      %p222 = scmp.eq.s32.totalorder %s37, 1
      %p223 = por %p221, %p222
      %p224 = scmp.ne.s32.totalorder %s215, %s216
      %p225 = scmp.eq.s32.totalorder %s37, 0
      %p226 = por %p224, %p225
      %p227 = scmp.ne.s32.totalorder %s215, %s216
      %p228 = scmp.eq.s32.totalorder %s38, 1
      %p229 = por %p227, %p228
      %p231 = scmp.ne.s32.totalorder %s216, %s230
      %p232 = scmp.eq.s32.totalorder %s38, 0
      %p233 = por %p231, %p232
      %s235 = sadd.s32 %s234, 1
      %p238 = scmp.eq.s32.totalorder %s32, 1
      %p239 = scmp.ne.s32.totalorder %s234, %s236
      %p240 = scmp.eq.s32.totalorder %s32, 0
      %p241 = por %p239, %p240
      %p242 = scmp.ne.s32.totalorder %s234, %s236
      %p243 = scmp.eq.s32.totalorder %s37, 1
      %p244 = por %p242, %p243
      %p245 = scmp.ne.s32.totalorder %s236, %s237
      %p246 = scmp.eq.s32.totalorder %s37, 0
      %p247 = por %p245, %p246
      %p248 = scmp.ne.s32.totalorder %s236, %s237
      %p249 = scmp.eq.s32.totalorder %s38, 1
      %p250 = por %p248, %p249
      %p252 = scmp.ne.s32.totalorder %s237, %s251
      %p253 = scmp.eq.s32.totalorder %s38, 0
      %p254 = por %p252, %p253
      %s256 = sadd.s32 %s255, 1
      %p259 = scmp.eq.s32.totalorder %s32, 1
      %p260 = scmp.ne.s32.totalorder %s255, %s257
      %p261 = scmp.eq.s32.totalorder %s32, 0
      %p262 = por %p260, %p261
      %p263 = scmp.ne.s32.totalorder %s255, %s257
      %p264 = scmp.eq.s32.totalorder %s37, 1
      %p265 = por %p263, %p264
      %p266 = scmp.ne.s32.totalorder %s257, %s258
      %p267 = scmp.eq.s32.totalorder %s37, 0
      %p268 = por %p266, %p267
      %p269 = scmp.ne.s32.totalorder %s257, %s258
      %p270 = scmp.eq.s32.totalorder %s38, 1
      %p271 = por %p269, %p270
      %p273 = scmp.ne.s32.totalorder %s258, %s272
      %p274 = scmp.eq.s32.totalorder %s38, 0
      %p275 = por %p273, %p274
      %s277 = sadd.s32 %s276, 1
      %p280 = scmp.eq.s32.totalorder %s32, 1
      %p281 = scmp.ne.s32.totalorder %s276, %s278
      %p282 = scmp.eq.s32.totalorder %s32, 0
      %p283 = por %p281, %p282
      %p284 = scmp.ne.s32.totalorder %s276, %s278
      %p285 = scmp.eq.s32.totalorder %s37, 1
      %p286 = por %p284, %p285
      %p287 = scmp.ne.s32.totalorder %s278, %s279
      %p288 = scmp.eq.s32.totalorder %s37, 0
      %p289 = por %p287, %p288
      %p290 = scmp.ne.s32.totalorder %s278, %s279
      %p291 = scmp.eq.s32.totalorder %s38, 1
      %p292 = por %p290, %p291
      %p294 = scmp.ne.s32.totalorder %s279, %s293
      %p295 = scmp.eq.s32.totalorder %s38, 0
      %p296 = por %p294, %p295
      %s297 = ssub.s32 %s32, %s39
      %p298 = scmp.eq.s32.totalorder %s297, 0
      %s300 = sadd.s32 %s299, 1
      %s301 = scalar_select %p298, %s299, %s300
      %p304 = pneg %p298
      %p305 = scmp.eq.s32.totalorder %s32, 1
      %p306 = por %p304, %p305
      %p307 = scmp.ne.s32.totalorder %s299, %s302
      %p308 = scmp.eq.s32.totalorder %s32, 0
      %p309 = por %p307, %p308
      %p310 = scmp.ne.s32.totalorder %s299, %s302
      %p311 = scmp.eq.s32.totalorder %s37, 1
      %p312 = por %p310, %p311
      %p313 = scmp.ne.s32.totalorder %s302, %s303
      %p314 = scmp.eq.s32.totalorder %s37, 0
      %p315 = por %p313, %p314
      %p316 = scmp.ne.s32.totalorder %s302, %s303
      %p317 = scmp.eq.s32.totalorder %s38, 1
      %p318 = por %p316, %p317
      %p320 = scmp.ne.s32.totalorder %s303, %s319
      %p321 = scmp.eq.s32.totalorder %s38, 0
      %p322 = por %p320, %p321
      %s323 = ssub.s32 %s32, %s39
      %p324 = scmp.eq.s32.totalorder %s323, 0
      %s326 = sadd.s32 %s325, 1
      %s327 = scalar_select %p324, %s325, %s326
      %p330 = pneg %p324
      %p331 = scmp.eq.s32.totalorder %s32, 1
      %p332 = por %p330, %p331
      %p333 = scmp.ne.s32.totalorder %s325, %s328
      %p334 = scmp.eq.s32.totalorder %s32, 0
      %p335 = por %p333, %p334
      %p336 = scmp.ne.s32.totalorder %s325, %s328
      %p337 = scmp.eq.s32.totalorder %s37, 1
      %p338 = por %p336, %p337
      %p339 = scmp.ne.s32.totalorder %s328, %s329
      %p340 = scmp.eq.s32.totalorder %s37, 0
      %p341 = por %p339, %p340
      %p342 = scmp.ne.s32.totalorder %s328, %s329
      %p343 = scmp.eq.s32.totalorder %s38, 1
      %p344 = por %p342, %p343
      %p346 = scmp.ne.s32.totalorder %s329, %s345
      %p347 = scmp.eq.s32.totalorder %s38, 0
      %p348 = por %p346, %p347
      %p349 = scmp.le.s32.totalorder 1, %s32
      %p350 = scmp.lt.s32.totalorder %s32, 3
      %p351 = pnand %p349, %p350
      %p352 = pneg %p351
      // Predicated region
      $region9: #{tpu_custom_call.1} parent=5 // pred_check
        _
      $region10: #{tpu_custom_call.1} parent=5 // pred_check_branch
        %354 = sbr.rel (%p351) target = $region12
      $region11: #{tpu_custom_call.1} parent=5 // pred_region
        %s355 = ssub.s32 %s32, 1
        // Predicated region
        $region13: #{tpu_custom_call.1} parent=11 // pred_check
          %p356 = pneg %p79
        $region14: #{tpu_custom_call.1} parent=11 // pred_check_branch
          %358 = sbr.rel (%p356) target = $region16
        $region15: #{tpu_custom_call.1} parent=11 // pred_region
          %s360 = ssub.s32 128, 128
          %361 = vsyncadd [#allocation6], %s360
          %s363 = sshll.u32 [#allocation5], 4
          %s364 = int_to_ptr.vmem [resolvable:$true] %s363
          %366 = dma.hbm_to_vmem [thread:$0]  %s1, 128, %s364, [#allocation6]
        $region16: #{tpu_custom_call.1} parent=11 // pred_fallthru
          _
        // Predicated region
        $region17: #{tpu_custom_call.1} parent=11 // pred_check
          %p367 = pneg %p100
        $region18: #{tpu_custom_call.1} parent=11 // pred_check_branch
          %369 = sbr.rel (%p367) target = $region20
        $region19: #{tpu_custom_call.1} parent=11 // pred_region
          %s371 = ssub.s32 256, 256
          %372 = vsyncadd [#allocation6], %s371
          %s373 = sshll.u32 [#allocation7], 4
          %s374 = int_to_ptr.vmem [resolvable:$true] %s373
          %379 = dma.hbm_to_vmem [thread:$0]  %s2, 256, %s374, [#allocation6], 64, 64, 4
        $region20: #{tpu_custom_call.1} parent=11 // pred_fallthru
          _
        // Predicated region
        $region21: #{tpu_custom_call.1} parent=11 // pred_check
          %p380 = pneg %p121
        $region22: #{tpu_custom_call.1} parent=11 // pred_check_branch
          %382 = sbr.rel (%p380) target = $region24
        $region23: #{tpu_custom_call.1} parent=11 // pred_region
          _
        $region24: #{tpu_custom_call.1} parent=11 // pred_fallthru
          _
        // Predicated region
        $region25: #{tpu_custom_call.1} parent=11 // pred_check
          %p383 = pneg %p142
        $region26: #{tpu_custom_call.1} parent=11 // pred_check_branch
          %385 = sbr.rel (%p383) target = $region28
        $region27: #{tpu_custom_call.1} parent=11 // pred_region
          %s387 = ssub.s32 256, 256
          %388 = vsyncadd [#allocation9], %s387
          %s389 = sshll.u32 [#allocation8], 4
          %s390 = int_to_ptr.vmem [resolvable:$true] %s389
          %395 = dma.hbm_to_vmem [thread:$0]  %s4, 256, %s390, [#allocation9], 64, 64, 4
        $region28: #{tpu_custom_call.1} parent=11 // pred_fallthru
          _
        // Predicated region
        $region29: #{tpu_custom_call.1} parent=11 // pred_check
          %p396 = pneg %p163
        $region30: #{tpu_custom_call.1} parent=11 // pred_check_branch
          %398 = sbr.rel (%p396) target = $region32
        $region31: #{tpu_custom_call.1} parent=11 // pred_region
          _
        $region32: #{tpu_custom_call.1} parent=11 // pred_fallthru
          _
        // Predicated region
        $region33: #{tpu_custom_call.1} parent=11 // pred_check
          %p399 = pneg %p184
        $region34: #{tpu_custom_call.1} parent=11 // pred_check_branch
          %401 = sbr.rel (%p399) target = $region36
        $region35: #{tpu_custom_call.1} parent=11 // pred_region
          %s403 = ssub.s32 256, 256
          %404 = vsyncadd [#allocation9], %s403
          %s405 = sshll.u32 [#allocation10], 4
          %s406 = int_to_ptr.vmem [resolvable:$true] %s405
          %411 = dma.hbm_to_vmem [thread:$0]  %s6, 256, %s406, [#allocation9], 64, 64, 4
        $region36: #{tpu_custom_call.1} parent=11 // pred_fallthru
          _
        // Predicated region
        $region37: #{tpu_custom_call.1} parent=11 // pred_check
          %p412 = pneg %p205
        $region38: #{tpu_custom_call.1} parent=11 // pred_check_branch
          %414 = sbr.rel (%p412) target = $region40
        $region39: #{tpu_custom_call.1} parent=11 // pred_region
          _
        $region40: #{tpu_custom_call.1} parent=11 // pred_fallthru
          _
        // Predicated region
        $region41: #{tpu_custom_call.1} parent=11 // pred_check
          %p415 = pneg %p226
        $region42: #{tpu_custom_call.1} parent=11 // pred_check_branch
          %417 = sbr.rel (%p415) target = $region44
        $region43: #{tpu_custom_call.1} parent=11 // pred_region
          %s419 = ssub.s32 256, 256
          %420 = vsyncadd [#allocation12], %s419
          %s421 = sshll.u32 [#allocation11], 4
          %s422 = int_to_ptr.vmem [resolvable:$true] %s421
          %427 = dma.hbm_to_vmem [thread:$0]  %s8, 256, %s422, [#allocation12], 64, 64, 4
        $region44: #{tpu_custom_call.1} parent=11 // pred_fallthru
          _
        // Predicated region
        $region45: #{tpu_custom_call.1} parent=11 // pred_check
          %p428 = pneg %p247
        $region46: #{tpu_custom_call.1} parent=11 // pred_check_branch
          %430 = sbr.rel (%p428) target = $region48
        $region47: #{tpu_custom_call.1} parent=11 // pred_region
          _
        $region48: #{tpu_custom_call.1} parent=11 // pred_fallthru
          _
        // Predicated region
        $region49: #{tpu_custom_call.1} parent=11 // pred_check
          %p431 = pneg %p268
        $region50: #{tpu_custom_call.1} parent=11 // pred_check_branch
          %433 = sbr.rel (%p431) target = $region52
        $region51: #{tpu_custom_call.1} parent=11 // pred_region
          _
        $region52: #{tpu_custom_call.1} parent=11 // pred_fallthru
          _
        // Predicated region
        $region53: #{tpu_custom_call.1} parent=11 // pred_check
          %p434 = pneg %p289
        $region54: #{tpu_custom_call.1} parent=11 // pred_check_branch
          %436 = sbr.rel (%p434) target = $region56
        $region55: #{tpu_custom_call.1} parent=11 // pred_region
          _
        $region56: #{tpu_custom_call.1} parent=11 // pred_fallthru
          _
      $region12: #{tpu_custom_call.1} parent=5 // pred_fallthru
        _
      %p437 = scmp.lt.s32.totalorder %s32, 2
      // Predicated region
      $region57: #{tpu_custom_call.1} parent=5 // pred_check
        %p438 = pneg %p437
      $region58: #{tpu_custom_call.1} parent=5 // pred_check_branch
        %440 = sbr.rel (%p438) target = $region60
      $region59: #{tpu_custom_call.1} parent=5 // pred_region
        // Predicated region
        $region61: #{tpu_custom_call.1} parent=59 // pred_check
          %p441 = pneg %p52
        $region62: #{tpu_custom_call.1} parent=59 // pred_check_branch
          %443 = sbr.rel (%p441) target = $region64
        $region63: #{tpu_custom_call.1} parent=59 // pred_region
          %s444 = sand.u32 %s42, 1
          %s445 = scalar_lea.sflag [#allocation3], %s444
          %s446 = sand.u32 %s42, 1
          %s447 = smul.addr %s446, 32
          %s448 = scalar_lea.vmem [#allocation2], %s447
          %s450 = ssub.s32 512, 512
          %451 = vsyncadd %s445, %s450
          %s452 = smul.addr %s32, 4
          %s453 = smul.addr %s452, 128
          %s454 = scalar_lea.hbm %s0, %s453
          %s455 = sshll.u32 %s448, 4
          %s456 = int_to_ptr.vmem [resolvable:$true] %s455
          %461 = dma.hbm_to_vmem [thread:$0]  %s454, 512, %s456, %s445, 128, 128, 8
        $region64: #{tpu_custom_call.1} parent=59 // pred_fallthru
          _
      $region60: #{tpu_custom_call.1} parent=5 // pred_fallthru
        _
      %p462 = scmp.le.s32.totalorder 1, %s32
      %p463 = scmp.lt.s32.totalorder %s32, 3
      %p464 = pnand %p462, %p463
      %p465 = pneg %p464
      // Predicated region
      $region65: #{tpu_custom_call.1} parent=5 // pred_check
        _
      $region66: #{tpu_custom_call.1} parent=5 // pred_check_branch
        %467 = sbr.rel (%p464) target = $region68
      $region67: #{tpu_custom_call.1} parent=5 // pred_region
        %s468 = ssub.s32 %s32, 1
        %s469 = sand.u32 %s45, 1
        %s470 = scalar_lea.sflag [#allocation3], %s469
        %s471 = sand.u32 %s45, 1
        %s472 = smul.addr %s471, 32
        %s473 = scalar_lea.vmem [#allocation2], %s472
        // Predicated region
        $region69: #{tpu_custom_call.1} parent=67 // pred_check
          %p474 = pneg %p58
        $region70: #{tpu_custom_call.1} parent=67 // pred_check_branch
          %476 = sbr.rel (%p474) target = $region72
        $region71: #{tpu_custom_call.1} parent=67 // pred_region
          %477 = dma.done %s470, 512
        $region72: #{tpu_custom_call.1} parent=67 // pred_fallthru
          _
        // Predicated region
        $region73: #{tpu_custom_call.1} parent=67 // pred_check
          %p478 = pneg %p79
        $region74: #{tpu_custom_call.1} parent=67 // pred_check_branch
          %480 = sbr.rel (%p478) target = $region76
        $region75: #{tpu_custom_call.1} parent=67 // pred_region
          %481 = dma.done [#allocation6], 128
        $region76: #{tpu_custom_call.1} parent=67 // pred_fallthru
          _
        // Predicated region
        $region77: #{tpu_custom_call.1} parent=67 // pred_check
          %p482 = pneg %p100
        $region78: #{tpu_custom_call.1} parent=67 // pred_check_branch
          %484 = sbr.rel (%p482) target = $region80
        $region79: #{tpu_custom_call.1} parent=67 // pred_region
          %485 = dma.done [#allocation6], 256
        $region80: #{tpu_custom_call.1} parent=67 // pred_fallthru
          _
        // Predicated region
        $region81: #{tpu_custom_call.1} parent=67 // pred_check
          %p486 = pneg %p142
        $region82: #{tpu_custom_call.1} parent=67 // pred_check_branch
          %488 = sbr.rel (%p486) target = $region84
        $region83: #{tpu_custom_call.1} parent=67 // pred_region
          %489 = dma.done [#allocation9], 256
        $region84: #{tpu_custom_call.1} parent=67 // pred_fallthru
          _
        // Predicated region
        $region85: #{tpu_custom_call.1} parent=67 // pred_check
          %p490 = pneg %p184
        $region86: #{tpu_custom_call.1} parent=67 // pred_check_branch
          %492 = sbr.rel (%p490) target = $region88
        $region87: #{tpu_custom_call.1} parent=67 // pred_region
          %493 = dma.done [#allocation9], 256
        $region88: #{tpu_custom_call.1} parent=67 // pred_fallthru
          _
        // Predicated region
        $region89: #{tpu_custom_call.1} parent=67 // pred_check
          %p494 = pneg %p226
        $region90: #{tpu_custom_call.1} parent=67 // pred_check_branch
          %496 = sbr.rel (%p494) target = $region92
        $region91: #{tpu_custom_call.1} parent=67 // pred_region
          %497 = dma.done [#allocation12], 256
        $region92: #{tpu_custom_call.1} parent=67 // pred_fallthru
          _
        %s498 = sand.u32 %s45, 1
        %s499 = scalar_lea.sflag [#allocation3], %s498
        %s500 = sand.u32 %s45, 1
        %s501 = smul.addr %s500, 32
        %s502 = scalar_lea.vmem [#allocation2], %s501
        %p503 = pneg %p58
        %p504 = pneg %p55
        %p505 = pneg %p79
        %p506 = pneg %p76
        %p507 = pneg %p100
        %p508 = pneg %p97
        %p509 = pneg %p121
        %p510 = pneg %p118
        %p511 = pneg %p142
        %p512 = pneg %p139
        %p513 = pneg %p163
        %p514 = pneg %p160
        %p515 = pneg %p184
        %p516 = pneg %p181
        %p517 = pneg %p205
        %p518 = pneg %p202
        %p519 = pneg %p226
        %p520 = pneg %p223
        %p521 = pneg %p247
        %p522 = pneg %p244
        %p523 = pneg %p268
        %p524 = pneg %p265
        %p525 = pneg %p289
        %p526 = pneg %p286
        %p527 = pneg %p315
        %p528 = pneg %p312
        %s529 = sand.u32 %s302, 1
        %s530 = scalar_lea.sflag [#allocation4], %s529
        %s531 = sand.u32 %s302, 1
        %s532 = smul.addr %s531, 32
        %s533 = scalar_lea.vmem [#allocation13], %s532
        %p534 = pneg %p341
        %p535 = pneg %p338
        %s536 = sand.u32 %s328, 1
        %s537 = scalar_lea.sflag [#allocation15], %s536
        %s538 = sand.u32 %s328, 1
        %s539 = smul.addr %s538, 16
        %s540 = scalar_lea.vmem [#allocation14], %s539
        %v542 = vld [vmem:[%s473] sm:$0xff]
        %v543 = vld [vmem:[%s473 + $0x8] sm:$0xff]
        %v544 = vld [vmem:[%s473 + $0x10] sm:$0xff]
        %v545 = vld [vmem:[%s473 + $0x18] sm:$0xff]
        %v546 = vld [vmem:[#allocation5] sm:$0xff]
        %v547 = vadd.f32 %v542, %v546
        %v548 = vadd.f32 %v543, %v546
        %v549 = vadd.f32 %v544, %v546
        %v550 = vadd.f32 %v545, %v546
        %v551 = vpack.c.bf16 %v548, %v547
        %v552 = vpack.c.bf16 %v550, %v549
        %v553 = vld [vmem:[#allocation7] sm:$0xf]
        %v554 = vld [vmem:[#allocation7 + $0x4] sm:$0xf]
        %v555 = vld [vmem:[#allocation7 + $0x8] sm:$0xf]
        %v556 = vld [vmem:[#allocation7 + $0xc] sm:$0xf]
        %v557 = vld [vmem:[%s3] sm:$0x1]
        %v559 = vlaneseq
        %v560 = vshrl.u32 %v559, 7
        %v561 = vsub.s32 0, %v560
        %v562 = vrot.slane %v557, %v561
        %v568 = vunpack.c.l.b16 %v553
        %v569 = vunpack.c.l.b16 %v554
        %v570 = vunpack.c.l.b16 %v555
        %v571 = vunpack.c.l.b16 %v556
        %v572 = vpack.c.b16 %v569, %v568
        %v573 = vpack.c.b16 %v571, %v570
        %vm576 = vcmask 261120
        %v578 = vsel %vm576, %v551, 0
        %v581 = vsel %vm576, %v552, 0
        %583 = vmatprep.subr.bf16.mxu0 0
        %584 = vmatpush1.bf16.msra.mxu0 0
        %585 = vmatprep.subr.bf16.mxu0 0
        %586 = vmatpush1.bf16.msra.mxu0 0
        %587 = vmatprep.subr.bf16.mxu0 0
        %588 = vmatpush1.bf16.msra.mxu0 0
        %589 = vmatprep.subr.bf16.mxu0 0
        %590 = vmatpush1.bf16.msra.mxu0 0
        %591 = vmatprep.subr.bf16.mxu0 0
        %592 = vmatpush1.bf16.msra.mxu0 0
        %593 = vmatprep.subr.bf16.mxu0 0
        %594 = vmatpush1.bf16.msra.mxu0 0
        %595 = vmatprep.subr.bf16.mxu0 0
        %596 = vmatpush1.bf16.msra.mxu0 %v573
        %597 = vmatprep.subr.bf16.mxu0 0
        %598 = vmatpush1.bf16.msra.mxu0 %v572
        %599 = vmatprep.subr.bf16.mxu0 0
        %600 = vmatpush2.bf16.msra.mxu0 0
        %601 = vmatprep.subr.bf16.mxu0 0
        %602 = vmatpush2.bf16.msra.mxu0 0
        %603 = vmatprep.subr.bf16.mxu0 0
        %604 = vmatpush2.bf16.msra.mxu0 0
        %605 = vmatprep.subr.bf16.mxu0 0
        %606 = vmatpush2.bf16.msra.mxu0 0
        %607 = vmatprep.subr.bf16.mxu0 0
        %608 = vmatpush2.bf16.msra.mxu0 0
        %609 = vmatprep.subr.bf16.mxu0 0
        %610 = vmatpush2.bf16.msra.mxu0 0
        %611 = vmatprep.subr.bf16.mxu0 0
        %612 = vmatpush2.bf16.msra.mxu0 0
        %613 = vmatprep.subr.bf16.mxu0 0
        %614 = vmatpush2.bf16.msra.mxu0 0
        %615 = vmatprep.mubr.bf16.mxu0 0
        %616 = vmatmul.mubr.bf16.gmra.mxu0 %v578
        %v617 = vpop.f32.mrf.mxu0
        %v618 = vadd.f32 %v562, %v617
        %v619 = vpop.f32.mrf.mxu0
        %v620 = vpop.f32.mrf.mxu0
        %v621 = vadd.f32 %v562, %v620
        %v622 = vpop.f32.mrf.mxu0
        %623 = vmatprep.mubr.bf16.mxu0 0
        %624 = vmatmul.mubr.bf16.gmra.mxu0 %v581
        %v625 = vpop.f32.mrf.mxu0
        %v626 = vadd.f32 %v562, %v625
        %v627 = vpop.f32.mrf.mxu0
        %v628 = vpop.f32.mrf.mxu0
        %v629 = vadd.f32 %v562, %v628
        %v630 = vpop.f32.mrf.mxu0
        %631 = vdwg.mxu0
        %636 = vrot.lane.b32.xlu0 %v618, 96
        %v637 = vpop.permute.xlu0 %636
        %638 = vrot.lane.b32.xlu0 %v621, 96
        %v639 = vpop.permute.xlu0 %638
        %640 = vrot.lane.b32.xlu0 %v626, 96
        %v641 = vpop.permute.xlu0 %640
        %642 = vrot.lane.b32.xlu0 %v629, 96
        %v643 = vpop.permute.xlu0 %642
        %v648 = vmul.f32 %v618, %v637
        %v649 = vmul.f32 %v618, %v639
        %v650 = vmul.f32 %v618, %v641
        %v651 = vmul.f32 %v618, %v643
        %v652 = vmul.f32 %v621, %v637
        %v653 = vmul.f32 %v621, %v639
        %v654 = vmul.f32 %v621, %v641
        %v655 = vmul.f32 %v621, %v643
        %v656 = vmul.f32 %v626, %v637
        %v657 = vmul.f32 %v626, %v639
        %v658 = vmul.f32 %v626, %v641
        %v659 = vmul.f32 %v626, %v643
        %v660 = vmul.f32 %v629, %v637
        %v661 = vmul.f32 %v629, %v639
        %v662 = vmul.f32 %v629, %v641
        %v663 = vmul.f32 %v629, %v643
        %v664 = vsel %vm576, %v648, 0.0
        %v665 = vrot.slane %v664, 4
        %v666 = vadd.f32 %v664, %v665
        %v667 = vrot.slane %v666, 2
        %v668 = vadd.f32 %v666, %v667
        %v669 = vrot.slane %v668, 1
        %v670 = vadd.f32 %v668, %v669
        %v671 = vsel %vm576, %v649, 0.0
        %v672 = vrot.slane %v671, 4
        %v673 = vadd.f32 %v671, %v672
        %v674 = vrot.slane %v673, 2
        %v675 = vadd.f32 %v673, %v674
        %v676 = vrot.slane %v675, 1
        %v677 = vadd.f32 %v675, %v676
        %v678 = vsel %vm576, %v650, 0.0
        %v679 = vrot.slane %v678, 4
        %v680 = vadd.f32 %v678, %v679
        %v681 = vrot.slane %v680, 2
        %v682 = vadd.f32 %v680, %v681
        %v683 = vrot.slane %v682, 1
        %v684 = vadd.f32 %v682, %v683
        %v685 = vsel %vm576, %v651, 0.0
        %v686 = vrot.slane %v685, 4
        %v687 = vadd.f32 %v685, %v686
        %v688 = vrot.slane %v687, 2
        %v689 = vadd.f32 %v687, %v688
        %v690 = vrot.slane %v689, 1
        %v691 = vadd.f32 %v689, %v690
        %v692 = vsel %vm576, %v652, 0.0
        %v693 = vrot.slane %v692, 4
        %v694 = vadd.f32 %v692, %v693
        %v695 = vrot.slane %v694, 2
        %v696 = vadd.f32 %v694, %v695
        %v697 = vrot.slane %v696, 1
        %v698 = vadd.f32 %v696, %v697
        %v699 = vsel %vm576, %v653, 0.0
        %v700 = vrot.slane %v699, 4
        %v701 = vadd.f32 %v699, %v700
        %v702 = vrot.slane %v701, 2
        %v703 = vadd.f32 %v701, %v702
        %v704 = vrot.slane %v703, 1
        %v705 = vadd.f32 %v703, %v704
        %v706 = vsel %vm576, %v654, 0.0
        %v707 = vrot.slane %v706, 4
        %v708 = vadd.f32 %v706, %v707
        %v709 = vrot.slane %v708, 2
        %v710 = vadd.f32 %v708, %v709
        %v711 = vrot.slane %v710, 1
        %v712 = vadd.f32 %v710, %v711
        %v713 = vsel %vm576, %v655, 0.0
        %v714 = vrot.slane %v713, 4
        %v715 = vadd.f32 %v713, %v714
        %v716 = vrot.slane %v715, 2
        %v717 = vadd.f32 %v715, %v716
        %v718 = vrot.slane %v717, 1
        %v719 = vadd.f32 %v717, %v718
        %v720 = vsel %vm576, %v656, 0.0
        %v721 = vrot.slane %v720, 4
        %v722 = vadd.f32 %v720, %v721
        %v723 = vrot.slane %v722, 2
        %v724 = vadd.f32 %v722, %v723
        %v725 = vrot.slane %v724, 1
        %v726 = vadd.f32 %v724, %v725
        %v727 = vsel %vm576, %v657, 0.0
        %v728 = vrot.slane %v727, 4
        %v729 = vadd.f32 %v727, %v728
        %v730 = vrot.slane %v729, 2
        %v731 = vadd.f32 %v729, %v730
        %v732 = vrot.slane %v731, 1
        %v733 = vadd.f32 %v731, %v732
        %v734 = vsel %vm576, %v658, 0.0
        %v735 = vrot.slane %v734, 4
        %v736 = vadd.f32 %v734, %v735
        %v737 = vrot.slane %v736, 2
        %v738 = vadd.f32 %v736, %v737
        %v739 = vrot.slane %v738, 1
        %v740 = vadd.f32 %v738, %v739
        %v741 = vsel %vm576, %v659, 0.0
        %v742 = vrot.slane %v741, 4
        %v743 = vadd.f32 %v741, %v742
        %v744 = vrot.slane %v743, 2
        %v745 = vadd.f32 %v743, %v744
        %v746 = vrot.slane %v745, 1
        %v747 = vadd.f32 %v745, %v746
        %v748 = vsel %vm576, %v660, 0.0
        %v749 = vrot.slane %v748, 4
        %v750 = vadd.f32 %v748, %v749
        %v751 = vrot.slane %v750, 2
        %v752 = vadd.f32 %v750, %v751
        %v753 = vrot.slane %v752, 1
        %v754 = vadd.f32 %v752, %v753
        %v755 = vsel %vm576, %v661, 0.0
        %v756 = vrot.slane %v755, 4
        %v757 = vadd.f32 %v755, %v756
        %v758 = vrot.slane %v757, 2
        %v759 = vadd.f32 %v757, %v758
        %v760 = vrot.slane %v759, 1
        %v761 = vadd.f32 %v759, %v760
        %v762 = vsel %vm576, %v662, 0.0
        %v763 = vrot.slane %v762, 4
        %v764 = vadd.f32 %v762, %v763
        %v765 = vrot.slane %v764, 2
        %v766 = vadd.f32 %v764, %v765
        %v767 = vrot.slane %v766, 1
        %v768 = vadd.f32 %v766, %v767
        %v769 = vsel %vm576, %v663, 0.0
        %v770 = vrot.slane %v769, 4
        %v771 = vadd.f32 %v769, %v770
        %v772 = vrot.slane %v771, 2
        %v773 = vadd.f32 %v771, %v772
        %v774 = vrot.slane %v773, 1
        %v775 = vadd.f32 %v773, %v774
        %v776 = vsel %vm576, %v670, -inf
        %v777 = vsel %vm576, %v677, -inf
        %v778 = vmax.f32 %v776, %v777
        %v779 = vsel %vm576, %v684, -inf
        %v780 = vmax.f32 %v778, %v779
        %v781 = vsel %vm576, %v691, -inf
        %v782 = vmax.f32 %v780, %v781
        %v783 = vsel %vm576, %v698, -inf
        %v784 = vsel %vm576, %v705, -inf
        %v785 = vmax.f32 %v783, %v784
        %v786 = vsel %vm576, %v712, -inf
        %v787 = vmax.f32 %v785, %v786
        %v788 = vsel %vm576, %v719, -inf
        %v789 = vmax.f32 %v787, %v788
        %v790 = vsel %vm576, %v726, -inf
        %v791 = vsel %vm576, %v733, -inf
        %v792 = vmax.f32 %v790, %v791
        %v793 = vsel %vm576, %v740, -inf
        %v794 = vmax.f32 %v792, %v793
        %v795 = vsel %vm576, %v747, -inf
        %v796 = vmax.f32 %v794, %v795
        %v797 = vsel %vm576, %v754, -inf
        %v798 = vsel %vm576, %v761, -inf
        %v799 = vmax.f32 %v797, %v798
        %v800 = vsel %vm576, %v768, -inf
        %v801 = vmax.f32 %v799, %v800
        %v802 = vsel %vm576, %v775, -inf
        %v803 = vmax.f32 %v801, %v802
        %v804 = vsub.f32 %v670, %v782
        %v805 = vsub.f32 %v677, %v782
        %v806 = vsub.f32 %v684, %v782
        %v807 = vsub.f32 %v691, %v782
        %v808 = vsub.f32 %v698, %v789
        %v809 = vsub.f32 %v705, %v789
        %v810 = vsub.f32 %v712, %v789
        %v811 = vsub.f32 %v719, %v789
        %v812 = vsub.f32 %v726, %v796
        %v813 = vsub.f32 %v733, %v796
        %v814 = vsub.f32 %v740, %v796
        %v815 = vsub.f32 %v747, %v796
        %v816 = vsub.f32 %v754, %v803
        %v817 = vsub.f32 %v761, %v803
        %v818 = vsub.f32 %v768, %v803
        %v819 = vsub.f32 %v775, %v803
        %v820 = vmul.f32 %v804, 1.442695
        %v821 = vpow.pop %v820
        %v822 = vmul.f32 %v805, 1.442695
        %v823 = vpow.pop %v822
        %v824 = vmul.f32 %v806, 1.442695
        %v825 = vpow.pop %v824
        %v826 = vmul.f32 %v807, 1.442695
        %v827 = vpow.pop %v826
        %v828 = vmul.f32 %v808, 1.442695
        %v829 = vpow.pop %v828
        %v830 = vmul.f32 %v809, 1.442695
        %v831 = vpow.pop %v830
        %v832 = vmul.f32 %v810, 1.442695
        %v833 = vpow.pop %v832
        %v834 = vmul.f32 %v811, 1.442695
        %v835 = vpow.pop %v834
        %v836 = vmul.f32 %v812, 1.442695
        %v837 = vpow.pop %v836
        %v838 = vmul.f32 %v813, 1.442695
        %v839 = vpow.pop %v838
        %v840 = vmul.f32 %v814, 1.442695
        %v841 = vpow.pop %v840
        %v842 = vmul.f32 %v815, 1.442695
        %v843 = vpow.pop %v842
        %v844 = vmul.f32 %v816, 1.442695
        %v845 = vpow.pop %v844
        %v846 = vmul.f32 %v817, 1.442695
        %v847 = vpow.pop %v846
        %v848 = vmul.f32 %v818, 1.442695
        %v849 = vpow.pop %v848
        %v850 = vmul.f32 %v819, 1.442695
        %v851 = vpow.pop %v850
        %v868 = vrot.slane %v823, 7
        %vm869 = vcmask 1041409
        %v870 = vsel %vm869, %v868, %v821
        %v871 = vrot.slane %v825, 6
        %vm872 = vcmask 1042434
        %v873 = vsel %vm872, %v871, %v870
        %v874 = vrot.slane %v827, 5
        %vm875 = vcmask 1043459
        %v876 = vsel %vm875, %v874, %v873
        %v877 = vrot.slane %v831, 7
        %v878 = vsel %vm869, %v877, %v829
        %v879 = vrot.slane %v833, 6
        %v880 = vsel %vm872, %v879, %v878
        %v881 = vrot.slane %v835, 5
        %v882 = vsel %vm875, %v881, %v880
        %v883 = vrot.slane %v839, 7
        %v884 = vsel %vm869, %v883, %v837
        %v885 = vrot.slane %v841, 6
        %v886 = vsel %vm872, %v885, %v884
        %v887 = vrot.slane %v843, 5
        %v888 = vsel %vm875, %v887, %v886
        %v889 = vrot.slane %v847, 7
        %v890 = vsel %vm869, %v889, %v845
        %v891 = vrot.slane %v849, 6
        %v892 = vsel %vm872, %v891, %v890
        %v893 = vrot.slane %v851, 5
        %v894 = vsel %vm875, %v893, %v892
        %vm899 = vcmask 257024
        %v900 = vsel %vm899, %v876, 0.0
        %v901 = vrot.slane %v900, 4
        %v902 = vadd.f32 %v900, %v901
        %v903 = vrot.slane %v902, 2
        %v904 = vadd.f32 %v902, %v903
        %v905 = vrot.slane %v904, 1
        %v906 = vadd.f32 %v904, %v905
        %v907 = vsel %vm899, %v882, 0.0
        %v908 = vrot.slane %v907, 4
        %v909 = vadd.f32 %v907, %v908
        %v910 = vrot.slane %v909, 2
        %v911 = vadd.f32 %v909, %v910
        %v912 = vrot.slane %v911, 1
        %v913 = vadd.f32 %v911, %v912
        %v914 = vsel %vm899, %v888, 0.0
        %v915 = vrot.slane %v914, 4
        %v916 = vadd.f32 %v914, %v915
        %v917 = vrot.slane %v916, 2
        %v918 = vadd.f32 %v916, %v917
        %v919 = vrot.slane %v918, 1
        %v920 = vadd.f32 %v918, %v919
        %v921 = vsel %vm899, %v894, 0.0
        %v922 = vrot.slane %v921, 4
        %v923 = vadd.f32 %v921, %v922
        %v924 = vrot.slane %v923, 2
        %v925 = vadd.f32 %v923, %v924
        %v926 = vrot.slane %v925, 1
        %v927 = vadd.f32 %v925, %v926
        %v928 = vrcp.pop %v906
        %v929 = vrcp.pop %v913
        %v930 = vrcp.pop %v920
        %v931 = vrcp.pop %v927
        %v932 = vlaneseq
        %v933 = vshrl.u32 %v932, 7
        %v934 = vsub.s32 0, %v933
        %v935 = vrot.slane %v928, %v934
        %v936 = vlaneseq
        %v937 = vshrl.u32 %v936, 7
        %v938 = vsub.s32 0, %v937
        %v939 = vrot.slane %v929, %v938
        %v940 = vlaneseq
        %v941 = vshrl.u32 %v940, 7
        %v942 = vsub.s32 0, %v941
        %v943 = vrot.slane %v930, %v942
        %v944 = vlaneseq
        %v945 = vshrl.u32 %v944, 7
        %v946 = vsub.s32 0, %v945
        %v947 = vrot.slane %v931, %v946
        %v948 = vmul.f32 %v821, %v935
        %v949 = vmul.f32 %v823, %v935
        %v950 = vmul.f32 %v825, %v935
        %v951 = vmul.f32 %v827, %v935
        %v952 = vmul.f32 %v829, %v939
        %v953 = vmul.f32 %v831, %v939
        %v954 = vmul.f32 %v833, %v939
        %v955 = vmul.f32 %v835, %v939
        %v956 = vmul.f32 %v837, %v943
        %v957 = vmul.f32 %v839, %v943
        %v958 = vmul.f32 %v841, %v943
        %v959 = vmul.f32 %v843, %v943
        %v960 = vmul.f32 %v845, %v947
        %v961 = vmul.f32 %v847, %v947
        %v962 = vmul.f32 %v849, %v947
        %v963 = vmul.f32 %v851, %v947
        %v980 = vrot.slane %v949, 7
        %v981 = vsel %vm869, %v980, %v948
        %v982 = vrot.slane %v950, 6
        %v983 = vsel %vm872, %v982, %v981
        %v984 = vrot.slane %v951, 5
        %v985 = vsel %vm875, %v984, %v983
        %v986 = vrot.slane %v953, 7
        %v987 = vsel %vm869, %v986, %v952
        %v988 = vrot.slane %v954, 6
        %v989 = vsel %vm872, %v988, %v987
        %v990 = vrot.slane %v955, 5
        %v991 = vsel %vm875, %v990, %v989
        %v992 = vrot.slane %v957, 7
        %v993 = vsel %vm869, %v992, %v956
        %v994 = vrot.slane %v958, 6
        %v995 = vsel %vm872, %v994, %v993
        %v996 = vrot.slane %v959, 5
        %v997 = vsel %vm875, %v996, %v995
        %v998 = vrot.slane %v961, 7
        %v999 = vsel %vm869, %v998, %v960
        %v1000 = vrot.slane %v962, 6
        %v1001 = vsel %vm872, %v1000, %v999
        %v1002 = vrot.slane %v963, 5
        %v1003 = vsel %vm875, %v1002, %v1001
        %1008 = vst.msk [vmem:[%s540] sm:$0xf] %vm899, %v985
        %1009 = vst.msk [vmem:[%s540 + $0x4] sm:$0xf] %vm899, %v991
        %1010 = vst.msk [vmem:[%s540 + $0x8] sm:$0xf] %vm899, %v997
        %1011 = vst.msk [vmem:[%s540 + $0xc] sm:$0xf] %vm899, %v1003
        %v1012 = vlaneseq
        %v1013 = vshrl.u32 %v1012, 7
        %v1014 = vsub.s32 0, %v1013
        %v1015 = vrot.slane %v948, %v1014
        %v1016 = vlaneseq
        %v1017 = vshrl.u32 %v1016, 7
        %v1018 = vsub.s32 0, %v1017
        %v1019 = vrot.slane %v949, %v1018
        %v1020 = vlaneseq
        %v1021 = vshrl.u32 %v1020, 7
        %v1022 = vsub.s32 0, %v1021
        %v1023 = vrot.slane %v950, %v1022
        %v1024 = vlaneseq
        %v1025 = vshrl.u32 %v1024, 7
        %v1026 = vsub.s32 0, %v1025
        %v1027 = vrot.slane %v951, %v1026
        %v1028 = vlaneseq
        %v1029 = vshrl.u32 %v1028, 7
        %v1030 = vsub.s32 0, %v1029
        %v1031 = vrot.slane %v952, %v1030
        %v1032 = vlaneseq
        %v1033 = vshrl.u32 %v1032, 7
        %v1034 = vsub.s32 0, %v1033
        %v1035 = vrot.slane %v953, %v1034
        %v1036 = vlaneseq
        %v1037 = vshrl.u32 %v1036, 7
        %v1038 = vsub.s32 0, %v1037
        %v1039 = vrot.slane %v954, %v1038
        %v1040 = vlaneseq
        %v1041 = vshrl.u32 %v1040, 7
        %v1042 = vsub.s32 0, %v1041
        %v1043 = vrot.slane %v955, %v1042
        %v1044 = vlaneseq
        %v1045 = vshrl.u32 %v1044, 7
        %v1046 = vsub.s32 0, %v1045
        %v1047 = vrot.slane %v956, %v1046
        %v1048 = vlaneseq
        %v1049 = vshrl.u32 %v1048, 7
        %v1050 = vsub.s32 0, %v1049
        %v1051 = vrot.slane %v957, %v1050
        %v1052 = vlaneseq
        %v1053 = vshrl.u32 %v1052, 7
        %v1054 = vsub.s32 0, %v1053
        %v1055 = vrot.slane %v958, %v1054
        %v1056 = vlaneseq
        %v1057 = vshrl.u32 %v1056, 7
        %v1058 = vsub.s32 0, %v1057
        %v1059 = vrot.slane %v959, %v1058
        %v1060 = vlaneseq
        %v1061 = vshrl.u32 %v1060, 7
        %v1062 = vsub.s32 0, %v1061
        %v1063 = vrot.slane %v960, %v1062
        %v1064 = vlaneseq
        %v1065 = vshrl.u32 %v1064, 7
        %v1066 = vsub.s32 0, %v1065
        %v1067 = vrot.slane %v961, %v1066
        %v1068 = vlaneseq
        %v1069 = vshrl.u32 %v1068, 7
        %v1070 = vsub.s32 0, %v1069
        %v1071 = vrot.slane %v962, %v1070
        %v1072 = vlaneseq
        %v1073 = vshrl.u32 %v1072, 7
        %v1074 = vsub.s32 0, %v1073
        %v1075 = vrot.slane %v963, %v1074
        %1076 = vrot.lane.b32.xlu0 %v618, 64
        %v1077 = vpop.permute.xlu0 %1076
        %1078 = vrot.lane.b32.xlu0 %v621, 64
        %v1079 = vpop.permute.xlu0 %1078
        %1080 = vrot.lane.b32.xlu0 %v626, 64
        %v1081 = vpop.permute.xlu0 %1080
        %1082 = vrot.lane.b32.xlu0 %v629, 64
        %v1083 = vpop.permute.xlu0 %1082
        %v1088 = vmul.f32 %v1015, %v1077
        %v1089 = vmul.f32 %v1019, %v1079
        %v1090 = vmul.f32 %v1023, %v1081
        %v1091 = vmul.f32 %v1027, %v1083
        %v1092 = vmul.f32 %v1031, %v1077
        %v1093 = vmul.f32 %v1035, %v1079
        %v1094 = vmul.f32 %v1039, %v1081
        %v1095 = vmul.f32 %v1043, %v1083
        %v1096 = vmul.f32 %v1047, %v1077
        %v1097 = vmul.f32 %v1051, %v1079
        %v1098 = vmul.f32 %v1055, %v1081
        %v1099 = vmul.f32 %v1059, %v1083
        %v1100 = vmul.f32 %v1063, %v1077
        %v1101 = vmul.f32 %v1067, %v1079
        %v1102 = vmul.f32 %v1071, %v1081
        %v1103 = vmul.f32 %v1075, %v1083
        %v1104 = vsel %vm576, %v1088, 0.0
        %v1105 = vsel %vm576, %v1089, 0.0
        %v1106 = vadd.f32 %v1104, %v1105
        %v1107 = vsel %vm576, %v1090, 0.0
        %v1108 = vadd.f32 %v1106, %v1107
        %v1109 = vsel %vm576, %v1091, 0.0
        %v1110 = vadd.f32 %v1108, %v1109
        %v1111 = vsel %vm576, %v1092, 0.0
        %v1112 = vsel %vm576, %v1093, 0.0
        %v1113 = vadd.f32 %v1111, %v1112
        %v1114 = vsel %vm576, %v1094, 0.0
        %v1115 = vadd.f32 %v1113, %v1114
        %v1116 = vsel %vm576, %v1095, 0.0
        %v1117 = vadd.f32 %v1115, %v1116
        %v1118 = vsel %vm576, %v1096, 0.0
        %v1119 = vsel %vm576, %v1097, 0.0
        %v1120 = vadd.f32 %v1118, %v1119
        %v1121 = vsel %vm576, %v1098, 0.0
        %v1122 = vadd.f32 %v1120, %v1121
        %v1123 = vsel %vm576, %v1099, 0.0
        %v1124 = vadd.f32 %v1122, %v1123
        %v1125 = vsel %vm576, %v1100, 0.0
        %v1126 = vsel %vm576, %v1101, 0.0
        %v1127 = vadd.f32 %v1125, %v1126
        %v1128 = vsel %vm576, %v1102, 0.0
        %v1129 = vadd.f32 %v1127, %v1128
        %v1130 = vsel %vm576, %v1103, 0.0
        %v1131 = vadd.f32 %v1129, %v1130
        %v1132 = vpack.c.bf16 %v1117, %v1110
        %v1133 = vpack.c.bf16 %v1131, %v1124
        %v1134 = vld [vmem:[#allocation8] sm:$0xf]
        %v1135 = vld [vmem:[#allocation8 + $0x4] sm:$0xf]
        %v1136 = vld [vmem:[#allocation8 + $0x8] sm:$0xf]
        %v1137 = vld [vmem:[#allocation8 + $0xc] sm:$0xf]
        %v1138 = vld [vmem:[%s5] sm:$0x1]
        %v1140 = vlaneseq
        %v1141 = vshrl.u32 %v1140, 7
        %v1142 = vsub.s32 0, %v1141
        %v1143 = vrot.slane %v1138, %v1142
        %v1149 = vunpack.c.l.b16 %v1134
        %v1150 = vunpack.c.l.b16 %v1135
        %v1151 = vunpack.c.l.b16 %v1136
        %v1152 = vunpack.c.l.b16 %v1137
        %v1153 = vpack.c.b16 %v1150, %v1149
        %v1154 = vpack.c.b16 %v1152, %v1151
        %v1158 = vsel %vm576, %v1132, 0
        %v1161 = vsel %vm576, %v1133, 0
        %1163 = vmatprep.subr.bf16.mxu0 0
        %1164 = vmatpush1.bf16.msra.mxu0 0
        %1165 = vmatprep.subr.bf16.mxu0 0
        %1166 = vmatpush1.bf16.msra.mxu0 0
        %1167 = vmatprep.subr.bf16.mxu0 0
        %1168 = vmatpush1.bf16.msra.mxu0 0
        %1169 = vmatprep.subr.bf16.mxu0 0
        %1170 = vmatpush1.bf16.msra.mxu0 0
        %1171 = vmatprep.subr.bf16.mxu0 0
        %1172 = vmatpush1.bf16.msra.mxu0 0
        %1173 = vmatprep.subr.bf16.mxu0 0
        %1174 = vmatpush1.bf16.msra.mxu0 0
        %1175 = vmatprep.subr.bf16.mxu0 0
        %1176 = vmatpush1.bf16.msra.mxu0 %v1154
        %1177 = vmatprep.subr.bf16.mxu0 0
        %1178 = vmatpush1.bf16.msra.mxu0 %v1153
        %1179 = vmatprep.subr.bf16.mxu0 0
        %1180 = vmatpush2.bf16.msra.mxu0 0
        %1181 = vmatprep.subr.bf16.mxu0 0
        %1182 = vmatpush2.bf16.msra.mxu0 0
        %1183 = vmatprep.subr.bf16.mxu0 0
        %1184 = vmatpush2.bf16.msra.mxu0 0
        %1185 = vmatprep.subr.bf16.mxu0 0
        %1186 = vmatpush2.bf16.msra.mxu0 0
        %1187 = vmatprep.subr.bf16.mxu0 0
        %1188 = vmatpush2.bf16.msra.mxu0 0
        %1189 = vmatprep.subr.bf16.mxu0 0
        %1190 = vmatpush2.bf16.msra.mxu0 0
        %1191 = vmatprep.subr.bf16.mxu0 0
        %1192 = vmatpush2.bf16.msra.mxu0 0
        %1193 = vmatprep.subr.bf16.mxu0 0
        %1194 = vmatpush2.bf16.msra.mxu0 0
        %1195 = vmatprep.mubr.bf16.mxu0 0
        %1196 = vmatmul.mubr.bf16.gmra.mxu0 %v1158
        %v1197 = vpop.f32.mrf.mxu0
        %v1198 = vadd.f32 %v1143, %v1197
        %v1199 = vpop.f32.mrf.mxu0
        %v1200 = vpop.f32.mrf.mxu0
        %v1201 = vadd.f32 %v1143, %v1200
        %v1202 = vpop.f32.mrf.mxu0
        %1203 = vmatprep.mubr.bf16.mxu0 0
        %1204 = vmatmul.mubr.bf16.gmra.mxu0 %v1161
        %v1205 = vpop.f32.mrf.mxu0
        %v1206 = vadd.f32 %v1143, %v1205
        %v1207 = vpop.f32.mrf.mxu0
        %v1208 = vpop.f32.mrf.mxu0
        %v1209 = vadd.f32 %v1143, %v1208
        %v1210 = vpop.f32.mrf.mxu0
        %1211 = vdwg.mxu0
        %v1212 = vmax.f32 %v1198, 0.0
        %v1213 = vmax.f32 %v1201, 0.0
        %v1214 = vmax.f32 %v1206, 0.0
        %v1215 = vmax.f32 %v1209, 0.0
        %v1216 = vpack.c.bf16 %v1213, %v1212
        %v1217 = vpack.c.bf16 %v1215, %v1214
        %v1218 = vld [vmem:[#allocation10] sm:$0xf]
        %v1219 = vld [vmem:[#allocation10 + $0x4] sm:$0xf]
        %v1220 = vld [vmem:[#allocation10 + $0x8] sm:$0xf]
        %v1221 = vld [vmem:[#allocation10 + $0xc] sm:$0xf]
        %v1222 = vld [vmem:[%s7] sm:$0x1]
        %v1224 = vlaneseq
        %v1225 = vshrl.u32 %v1224, 7
        %v1226 = vsub.s32 0, %v1225
        %v1227 = vrot.slane %v1222, %v1226
        %v1233 = vunpack.c.l.b16 %v1218
        %v1234 = vunpack.c.l.b16 %v1219
        %v1235 = vunpack.c.l.b16 %v1220
        %v1236 = vunpack.c.l.b16 %v1221
        %v1237 = vpack.c.b16 %v1234, %v1233
        %v1238 = vpack.c.b16 %v1236, %v1235
        %v1242 = vsel %vm576, %v1216, 0
        %v1245 = vsel %vm576, %v1217, 0
        %1247 = vmatprep.subr.bf16.mxu0 0
        %1248 = vmatpush1.bf16.msra.mxu0 0
        %1249 = vmatprep.subr.bf16.mxu0 0
        %1250 = vmatpush1.bf16.msra.mxu0 0
        %1251 = vmatprep.subr.bf16.mxu0 0
        %1252 = vmatpush1.bf16.msra.mxu0 0
        %1253 = vmatprep.subr.bf16.mxu0 0
        %1254 = vmatpush1.bf16.msra.mxu0 0
        %1255 = vmatprep.subr.bf16.mxu0 0
        %1256 = vmatpush1.bf16.msra.mxu0 0
        %1257 = vmatprep.subr.bf16.mxu0 0
        %1258 = vmatpush1.bf16.msra.mxu0 0
        %1259 = vmatprep.subr.bf16.mxu0 0
        %1260 = vmatpush1.bf16.msra.mxu0 %v1238
        %1261 = vmatprep.subr.bf16.mxu0 0
        %1262 = vmatpush1.bf16.msra.mxu0 %v1237
        %1263 = vmatprep.subr.bf16.mxu0 0
        %1264 = vmatpush2.bf16.msra.mxu0 0
        %1265 = vmatprep.subr.bf16.mxu0 0
        %1266 = vmatpush2.bf16.msra.mxu0 0
        %1267 = vmatprep.subr.bf16.mxu0 0
        %1268 = vmatpush2.bf16.msra.mxu0 0
        %1269 = vmatprep.subr.bf16.mxu0 0
        %1270 = vmatpush2.bf16.msra.mxu0 0
        %1271 = vmatprep.subr.bf16.mxu0 0
        %1272 = vmatpush2.bf16.msra.mxu0 0
        %1273 = vmatprep.subr.bf16.mxu0 0
        %1274 = vmatpush2.bf16.msra.mxu0 0
        %1275 = vmatprep.subr.bf16.mxu0 0
        %1276 = vmatpush2.bf16.msra.mxu0 0
        %1277 = vmatprep.subr.bf16.mxu0 0
        %1278 = vmatpush2.bf16.msra.mxu0 0
        %1279 = vmatprep.mubr.bf16.mxu0 0
        %1280 = vmatmul.mubr.bf16.gmra.mxu0 %v1242
        %v1281 = vpop.f32.mrf.mxu0
        %v1282 = vadd.f32 %v1227, %v1281
        %v1283 = vpop.f32.mrf.mxu0
        %v1284 = vpop.f32.mrf.mxu0
        %v1285 = vadd.f32 %v1227, %v1284
        %v1286 = vpop.f32.mrf.mxu0
        %1287 = vmatprep.mubr.bf16.mxu0 0
        %1288 = vmatmul.mubr.bf16.gmra.mxu0 %v1245
        %v1289 = vpop.f32.mrf.mxu0
        %v1290 = vadd.f32 %v1227, %v1289
        %v1291 = vpop.f32.mrf.mxu0
        %v1292 = vpop.f32.mrf.mxu0
        %v1293 = vadd.f32 %v1227, %v1292
        %v1294 = vpop.f32.mrf.mxu0
        %1295 = vdwg.mxu0
        %v1296 = vmax.f32 %v1282, 0.0
        %v1297 = vmax.f32 %v1285, 0.0
        %v1298 = vmax.f32 %v1290, 0.0
        %v1299 = vmax.f32 %v1293, 0.0
        %v1300 = vpack.c.bf16 %v1297, %v1296
        %v1301 = vpack.c.bf16 %v1299, %v1298
        %v1302 = vld [vmem:[#allocation11] sm:$0xf]
        %v1303 = vld [vmem:[#allocation11 + $0x4] sm:$0xf]
        %v1304 = vld [vmem:[#allocation11 + $0x8] sm:$0xf]
        %v1305 = vld [vmem:[#allocation11 + $0xc] sm:$0xf]
        %v1306 = vld [vmem:[%s9] sm:$0x1]
        %v1308 = vlaneseq
        %v1309 = vshrl.u32 %v1308, 7
        %v1310 = vsub.s32 0, %v1309
        %v1311 = vrot.slane %v1306, %v1310
        %v1317 = vunpack.c.l.b16 %v1302
        %v1318 = vunpack.c.l.b16 %v1303
        %v1319 = vunpack.c.l.b16 %v1304
        %v1320 = vunpack.c.l.b16 %v1305
        %v1321 = vpack.c.b16 %v1318, %v1317
        %v1322 = vpack.c.b16 %v1320, %v1319
        %v1326 = vsel %vm576, %v1300, 0
        %v1329 = vsel %vm576, %v1301, 0
        %1331 = vmatprep.subr.bf16.mxu0 0
        %1332 = vmatpush1.bf16.msra.mxu0 0
        %1333 = vmatprep.subr.bf16.mxu0 0
        %1334 = vmatpush1.bf16.msra.mxu0 0
        %1335 = vmatprep.subr.bf16.mxu0 0
        %1336 = vmatpush1.bf16.msra.mxu0 0
        %1337 = vmatprep.subr.bf16.mxu0 0
        %1338 = vmatpush1.bf16.msra.mxu0 0
        %1339 = vmatprep.subr.bf16.mxu0 0
        %1340 = vmatpush1.bf16.msra.mxu0 0
        %1341 = vmatprep.subr.bf16.mxu0 0
        %1342 = vmatpush1.bf16.msra.mxu0 0
        %1343 = vmatprep.subr.bf16.mxu0 0
        %1344 = vmatpush1.bf16.msra.mxu0 %v1322
        %1345 = vmatprep.subr.bf16.mxu0 0
        %1346 = vmatpush1.bf16.msra.mxu0 %v1321
        %1347 = vmatprep.subr.bf16.mxu0 0
        %1348 = vmatpush2.bf16.msra.mxu0 0
        %1349 = vmatprep.subr.bf16.mxu0 0
        %1350 = vmatpush2.bf16.msra.mxu0 0
        %1351 = vmatprep.subr.bf16.mxu0 0
        %1352 = vmatpush2.bf16.msra.mxu0 0
        %1353 = vmatprep.subr.bf16.mxu0 0
        %1354 = vmatpush2.bf16.msra.mxu0 0
        %1355 = vmatprep.subr.bf16.mxu0 0
        %1356 = vmatpush2.bf16.msra.mxu0 0
        %1357 = vmatprep.subr.bf16.mxu0 0
        %1358 = vmatpush2.bf16.msra.mxu0 0
        %1359 = vmatprep.subr.bf16.mxu0 0
        %1360 = vmatpush2.bf16.msra.mxu0 0
        %1361 = vmatprep.subr.bf16.mxu0 0
        %1362 = vmatpush2.bf16.msra.mxu0 0
        %1363 = vmatprep.mubr.bf16.mxu0 0
        %1364 = vmatmul.mubr.bf16.gmra.mxu0 %v1326
        %v1365 = vpop.f32.mrf.mxu0
        %v1366 = vadd.f32 %v1311, %v1365
        %v1367 = vpop.f32.mrf.mxu0
        %v1368 = vpop.f32.mrf.mxu0
        %v1369 = vadd.f32 %v1311, %v1368
        %v1370 = vpop.f32.mrf.mxu0
        %1371 = vmatprep.mubr.bf16.mxu0 0
        %1372 = vmatmul.mubr.bf16.gmra.mxu0 %v1329
        %v1373 = vpop.f32.mrf.mxu0
        %v1374 = vadd.f32 %v1311, %v1373
        %v1375 = vpop.f32.mrf.mxu0
        %v1376 = vpop.f32.mrf.mxu0
        %v1377 = vadd.f32 %v1311, %v1376
        %v1378 = vpop.f32.mrf.mxu0
        %1379 = vdwg.mxu0
        %v1380 = vsel %vm576, %v1366, 0.0
        %1381 = vadd.xlane.f32.xlu0 %v1380
        %v1382 = vpop.xlane.xlu0 %1381
        %v1383 = vsel %vm576, %v1369, 0.0
        %1384 = vadd.xlane.f32.xlu0 %v1383
        %v1385 = vpop.xlane.xlu0 %1384
        %v1386 = vsel %vm576, %v1374, 0.0
        %1387 = vadd.xlane.f32.xlu0 %v1386
        %v1388 = vpop.xlane.xlu0 %1387
        %v1389 = vsel %vm576, %v1377, 0.0
        %1390 = vadd.xlane.f32.xlu0 %v1389
        %v1391 = vpop.xlane.xlu0 %1390
        %v1392 = vrcp.pop 32.0
        %v1393 = vmul.f32 %v1382, %v1392
        %v1394 = vmul.f32 %v1385, %v1392
        %v1395 = vmul.f32 %v1388, %v1392
        %v1396 = vmul.f32 %v1391, %v1392
        %v1397 = vmul.f32 %v1366, %v1366
        %v1398 = vmul.f32 %v1369, %v1369
        %v1399 = vmul.f32 %v1374, %v1374
        %v1400 = vmul.f32 %v1377, %v1377
        %v1401 = vsel %vm576, %v1397, 0.0
        %1402 = vadd.xlane.f32.xlu0 %v1401
        %v1403 = vpop.xlane.xlu0 %1402
        %v1404 = vsel %vm576, %v1398, 0.0
        %1405 = vadd.xlane.f32.xlu0 %v1404
        %v1406 = vpop.xlane.xlu0 %1405
        %v1407 = vsel %vm576, %v1399, 0.0
        %1408 = vadd.xlane.f32.xlu0 %v1407
        %v1409 = vpop.xlane.xlu0 %1408
        %v1410 = vsel %vm576, %v1400, 0.0
        %1411 = vadd.xlane.f32.xlu0 %v1410
        %v1412 = vpop.xlane.xlu0 %1411
        %v1413 = vmul.f32 %v1403, %v1392
        %v1414 = vmul.f32 %v1406, %v1392
        %v1415 = vmul.f32 %v1409, %v1392
        %v1416 = vmul.f32 %v1412, %v1392
        %v1417 = vmul.f32 %v1393, %v1393
        %v1418 = vmul.f32 %v1394, %v1394
        %v1419 = vmul.f32 %v1395, %v1395
        %v1420 = vmul.f32 %v1396, %v1396
        %v1421 = vsub.f32 %v1413, %v1417
        %v1422 = vsub.f32 %v1414, %v1418
        %v1423 = vsub.f32 %v1415, %v1419
        %v1424 = vsub.f32 %v1416, %v1420
        %v1425 = vsub.f32 %v1366, %v1393
        %v1426 = vsub.f32 %v1369, %v1394
        %v1427 = vsub.f32 %v1374, %v1395
        %v1428 = vsub.f32 %v1377, %v1396
        %v1429 = vadd.f32 %v1421, 1e-05
        %v1430 = vadd.f32 %v1422, 1e-05
        %v1431 = vadd.f32 %v1423, 1e-05
        %v1432 = vadd.f32 %v1424, 1e-05
        %v1433 = vrsqrt.pop %v1429
        %v1434 = vrsqrt.pop %v1430
        %v1435 = vrsqrt.pop %v1431
        %v1436 = vrsqrt.pop %v1432
        %v1437 = vmul.f32 %v1425, %v1433
        %v1438 = vmul.f32 %v1426, %v1434
        %v1439 = vmul.f32 %v1427, %v1435
        %v1440 = vmul.f32 %v1428, %v1436
        %v1441 = vld [vmem:[%s10] sm:$0x1]
        %v1443 = vlaneseq
        %v1444 = vshrl.u32 %v1443, 7
        %v1445 = vsub.s32 0, %v1444
        %v1446 = vrot.slane %v1441, %v1445
        %v1448 = vmul.f32 %v1437, %v1446
        %v1449 = vmul.f32 %v1438, %v1446
        %v1450 = vmul.f32 %v1439, %v1446
        %v1451 = vmul.f32 %v1440, %v1446
        %v1452 = vld [vmem:[%s11] sm:$0x1]
        %v1454 = vlaneseq
        %v1455 = vshrl.u32 %v1454, 7
        %v1456 = vsub.s32 0, %v1455
        %v1457 = vrot.slane %v1452, %v1456
        %v1459 = vadd.f32 %v1448, %v1457
        %v1460 = vadd.f32 %v1449, %v1457
        %v1461 = vadd.f32 %v1450, %v1457
        %v1462 = vadd.f32 %v1451, %v1457
        %1463 = vst.msk [vmem:[%s533] sm:$0xff] %vm576, %v1459
        %1464 = vst.msk [vmem:[%s533 + $0x8] sm:$0xff] %vm576, %v1460
        %1465 = vst.msk [vmem:[%s533 + $0x10] sm:$0xff] %vm576, %v1461
        %1466 = vst.msk [vmem:[%s533 + $0x18] sm:$0xff] %vm576, %v1462
        %s1467 = sand.u32 %s302, 1
        %s1468 = scalar_lea.sflag [#allocation4], %s1467
        %s1469 = sand.u32 %s302, 1
        %s1470 = smul.addr %s1469, 32
        %s1471 = scalar_lea.vmem [#allocation13], %s1470
        %s1472 = sand.u32 %s328, 1
        %s1473 = scalar_lea.sflag [#allocation15], %s1472
        %s1474 = sand.u32 %s328, 1
        %s1475 = smul.addr %s1474, 16
        %s1476 = scalar_lea.vmem [#allocation14], %s1475
        // Predicated region
        $region93: #{tpu_custom_call.1} parent=67 // pred_check
          %p1477 = pneg %p312
        $region94: #{tpu_custom_call.1} parent=67 // pred_check_branch
          %1479 = sbr.rel (%p1477) target = $region96
        $region95: #{tpu_custom_call.1} parent=67 // pred_region
          %s1481 = ssub.s32 512, 512
          %1482 = vsyncadd %s1468, %s1481
          %s1483 = smul.addr %s37, 4
          %s1484 = smul.addr %s1483, 128
          %s1485 = scalar_lea.hbm %s12, %s1484
          %s1486 = sshll.u32 %s1471, 4
          %s1487 = int_to_ptr.vmem [resolvable:$true] %s1486
          %1492 = dma.vmem_to_hbm [thread:$0]  %s1487, 512, %s1485, %s1468, 128, 128, 8
        $region96: #{tpu_custom_call.1} parent=67 // pred_fallthru
          _
        // Predicated region
        $region97: #{tpu_custom_call.1} parent=67 // pred_check
          %p1493 = pneg %p338
        $region98: #{tpu_custom_call.1} parent=67 // pred_check_branch
          %1495 = sbr.rel (%p1493) target = $region100
        $region99: #{tpu_custom_call.1} parent=67 // pred_region
          %s1497 = ssub.s32 256, 256
          %1498 = vsyncadd %s1473, %s1497
          %s1499 = smul.addr %s37, 4
          %s1500 = smul.addr %s1499, 64
          %s1501 = scalar_lea.hbm %s13, %s1500
          %s1502 = sshll.u32 %s1476, 4
          %s1503 = int_to_ptr.vmem [resolvable:$true] %s1502
          %1508 = dma.vmem_to_hbm [thread:$0]  %s1503, 256, %s1501, %s1473, 64, 64, 4
        $region100: #{tpu_custom_call.1} parent=67 // pred_fallthru
          _
      $region68: #{tpu_custom_call.1} parent=5 // pred_fallthru
        _
      %p1509 = scmp.le.s32.totalorder 2, %s32
      // Predicated region
      $region101: #{tpu_custom_call.1} parent=5 // pred_check
        %p1510 = pneg %p1509
      $region102: #{tpu_custom_call.1} parent=5 // pred_check_branch
        %1512 = sbr.rel (%p1510) target = $region104
      $region103: #{tpu_custom_call.1} parent=5 // pred_region
        %s1513 = ssub.s32 %s32, 2
        // Predicated region
        $region105: #{tpu_custom_call.1} parent=103 // pred_check
          %p1514 = pneg %p318
        $region106: #{tpu_custom_call.1} parent=103 // pred_check_branch
          %1516 = sbr.rel (%p1514) target = $region108
        $region107: #{tpu_custom_call.1} parent=103 // pred_region
          %s1517 = sand.u32 %s303, 1
          %s1518 = scalar_lea.sflag [#allocation4], %s1517
          %s1519 = sand.u32 %s303, 1
          %s1520 = smul.addr %s1519, 32
          %s1521 = scalar_lea.vmem [#allocation13], %s1520
          %1522 = dma.done %s1518, 512
        $region108: #{tpu_custom_call.1} parent=103 // pred_fallthru
          _
        // Predicated region
        $region109: #{tpu_custom_call.1} parent=103 // pred_check
          %p1523 = pneg %p344
        $region110: #{tpu_custom_call.1} parent=103 // pred_check_branch
          %1525 = sbr.rel (%p1523) target = $region112
        $region111: #{tpu_custom_call.1} parent=103 // pred_region
          %s1526 = sand.u32 %s329, 1
          %s1527 = scalar_lea.sflag [#allocation15], %s1526
          %s1528 = sand.u32 %s329, 1
          %s1529 = smul.addr %s1528, 16
          %s1530 = scalar_lea.vmem [#allocation14], %s1529
          %1531 = dma.done %s1527, 256
        $region112: #{tpu_custom_call.1} parent=103 // pred_fallthru
          _
      $region104: #{tpu_custom_call.1} parent=5 // pred_fallthru
        _
    $region6: #{tpu_custom_call.1} parent=1 // loop_footer
      %s36 = sadd.s32 1, %s32
    $region7: #{tpu_custom_call.1} parent=1 // loop_footer_branch
      %31 = sbr.rel target = $region3
    $region8: #{tpu_custom_call.1} parent=1 // loop_exit
      _
    %1532 = vsyncpa [#allocation3], 1
    %s1533 = scalar_lea.sflag [#allocation3], 1
    %1534 = vsyncpa %s1533, 1
    %1535 = vsyncpa [#allocation6], 1
    %1536 = vsyncpa [#allocation9], 1
    %1537 = vsyncpa [#allocation12], 1
    %1538 = vsyncpa [#allocation4], 1
    %s1539 = scalar_lea.sflag [#allocation4], 1
    %1540 = vsyncpa %s1539, 1
    %1541 = vsyncpa [#allocation15], 1
    %s1542 = scalar_lea.sflag [#allocation15], 1
    %1543 = vsyncpa %s1542, 1

</llo_original>
